<compile_context>
chip_gen: v6e
topology: v6e:2x2x1
jax: 0.10.0
libtpu: 0.0.40
codegen_flags: <defaults>
</compile_context>

<pallas_src>
import math

import jax
import jax.numpy as jnp
from jax import lax
from jax.experimental import pallas as pl
from jax.experimental.pallas import tpu as pltpu


def lstm_model_kernel(x_ref, wih0_ref, whh0_ref, b0_ref,
                      wih1_ref, whh1_ref, b1_ref,
                      fc1w_ref, fc1b_ref, fc2w_ref, fc2b_ref,
                      out_ref):
    """Whole forward pass in one kernel (small shapes -> everything in VMEM).

    Refs (all VMEM):
      x_ref    : (T, B, D)   time-major input
      wih0_ref : (D, 4H)     layer-0 input weights, pre-transposed, i/f/o cols pre-scaled by 0.5
      whh0_ref : (H, 4H)     layer-0 recurrent weights, same pre-scaling
      b0_ref   : (1, 4H)     (b_ih_l0 + b_hh_l0), same pre-scaling
      wih1_ref : (H, 4H), whh1_ref : (H, 4H), b1_ref : (1, 4H)   layer 1
      fc1w_ref : (H, F1), fc1b_ref : (1, F1)
      fc2w_ref : (F1, O), fc2b_ref : (1, O)
      out_ref  : (B, O)
    """
    T, B, D = x_ref.shape
    H4 = whh0_ref.shape[1]          # 4H (== 128 at the model's shapes -> one lane tile)
    H = H4 // 4

    x = x_ref[...]                                   # (T, B, D)

    # Hoisted per-lane constants (one vreg each, shared by both layers).
    # Gate order along lanes (PyTorch): [i | f | g | o]; g block is [2H, 3H).
    lane = lax.broadcasted_iota(jnp.int32, (B, H4), 1)
    g_mask = (lane >= 2 * H) & (lane < 3 * H)
    act_a = jnp.where(g_mask, 1.0, 0.5).astype(jnp.float32)   # tanh vs 0.5*tanh
    act_b = jnp.where(g_mask, 0.0, 0.5).astype(jnp.float32)   # ... (+0.5 for sigmoid)

    def run_layer(pre, whh):
        """pre: (T*B, 4H) precomputed x_t @ W_ih^T + bias (pre-scaled);  whh: (H, 4H)."""
        h = jnp.zeros((B, H), jnp.float32)
        # c is carried padded to 4H lanes; only lanes [0, H) are meaningful.
        # Padding lanes stay bounded (products of sigmoids/tanhs) and never feed
        # anything real.
        c = jnp.zeros((B, H4), jnp.float32)
        hs = []
        for t in range(T):                            # T is static -> fully unrolled
            gates = pre[t * B:(t + 1) * B, :] + jnp.dot(
                h, whh, preferred_element_type=jnp.float32)        # (B, 4H), pre-scaled
            # Single EUP pass: tanh over the whole gate tile, then an FMA with
            # hoisted constants recovers [sig(i) | sig(f) | tanh(g) | sig(o)].
            t_g = jnp.tanh(gates)
            act = t_g * act_a + act_b
            f_al = pltpu.roll(act, 3 * H, axis=1)     # f block -> lanes [0, H)
            g_al = pltpu.roll(act, 2 * H, axis=1)     # g block -> lanes [0, H)
            o_al = pltpu.roll(act, 1 * H, axis=1)     # o block -> lanes [0, H)
            c = f_al * c + act * g_al                 # act lanes [0, H) hold sig(i)
            h_full = o_al * jnp.tanh(c)               # (B, 4H); lanes [0, H) valid
            h = h_full[:, :H]                         # true hidden state (B, H)
            hs.append(h)
        return hs

    # ---------------- LSTM layer 0 ----------------
    # Batched input projection for all time steps at once (off the serial chain).
    pre0 = jnp.dot(x.reshape(T * B, D), wih0_ref[...],
                   preferred_element_type=jnp.float32) + b0_ref[...]
    hs0 = run_layer(pre0, whh0_ref[...])

    # ---------------- LSTM layer 1 ----------------
    # TODO(synk): nn.LSTM inter-layer dropout and nn.Dropout are identity in
    # eval mode; training-mode dropout masks are not implemented here.
    seq0 = jnp.concatenate(hs0, axis=0)               # (T*B, H)
    pre1 = jnp.dot(seq0, wih1_ref[...],
                   preferred_element_type=jnp.float32) + b1_ref[...]
    hs1 = run_layer(pre1, whh1_ref[...])

    # ---------------- head ----------------
    o_last = hs1[-1]                                  # o[:, -1] -> (B, H)
    z1 = jnp.dot(o_last, fc1w_ref[...],
                 preferred_element_type=jnp.float32) + fc1b_ref[...]
    z1 = jax.nn.sigmoid(z1)                           # drop(sigmoid(.)) == sigmoid(.) in eval
    z2 = jnp.dot(z1, fc2w_ref[...],
                 preferred_element_type=jnp.float32) + fc2b_ref[...]
    m = jnp.mean(x, axis=0)                           # mean over sequence -> (B, D)
    out_ref[...] = z2 + m


def init_params(key, input_size, hidden_size, fc1_size, output_size):
    """Deterministic parameter init matching the PyTorch module's shapes."""
    ks = jax.random.split(key, 12)

    def u(k, shape, scale):
        return jax.random.uniform(k, shape, jnp.float32, -scale, scale)

    kh = 1.0 / math.sqrt(hidden_size)
    k1 = 1.0 / math.sqrt(hidden_size)
    k2 = 1.0 / math.sqrt(fc1_size)
    return {
        # nn.LSTM, num_layers=2
        "wih0": u(ks[0], (4 * hidden_size, input_size), kh),
        "whh0": u(ks[1], (4 * hidden_size, hidden_size), kh),
        "bih0": u(ks[2], (4 * hidden_size,), kh),
        "bhh0": u(ks[3], (4 * hidden_size,), kh),
        "wih1": u(ks[4], (4 * hidden_size, hidden_size), kh),
        "whh1": u(ks[5], (4 * hidden_size, hidden_size), kh),
        "bih1": u(ks[6], (4 * hidden_size,), kh),
        "bhh1": u(ks[7], (4 * hidden_size,), kh),
        # nn.Linear(hidden_size, fc_1)
        "fc1_w": u(ks[8], (fc1_size, hidden_size), k1),
        "fc1_b": u(ks[9], (fc1_size,), k1),
        # nn.Linear(fc_1, output_size)
        "fc2_w": u(ks[10], (output_size, fc1_size), k2),
        "fc2_b": u(ks[11], (output_size,), k2),
    }


def lstm_model_forward(x, p):
    """x: (B, T, input_size) batch_first, like the PyTorch module."""
    B, T, D = x.shape
    H = p["whh0"].shape[1]
    F1 = p["fc1_w"].shape[0]
    O = p["fc2_w"].shape[0]
    if O != D:
        raise ValueError("output_size must equal input_size for the `o + m` residual")

    x_tm = jnp.transpose(x, (1, 0, 2)).astype(jnp.float32)        # (T, B, D)

    H4 = 4 * H
    # Pre-scale i/f/o gate columns by 0.5 so the kernel can use the identity
    # sigmoid(z) = 0.5*tanh(z/2) + 0.5 with a single tanh per step.
    lane = jnp.arange(H4)
    g_sel = (lane >= 2 * H) & (lane < 3 * H)
    gscale = jnp.where(g_sel, 1.0, 0.5).astype(jnp.float32)       # (4H,)

    # Pre-transpose weights so the kernel does x @ W (MXU-friendly, no in-kernel T).
    wih0 = p["wih0"].T * gscale[None, :]                          # (D, 4H)
    whh0 = p["whh0"].T * gscale[None, :]                          # (H, 4H)
    b0 = ((p["bih0"] + p["bhh0"]) * gscale).reshape(1, H4)
    wih1 = p["wih1"].T * gscale[None, :]                          # (H, 4H)
    whh1 = p["whh1"].T * gscale[None, :]                          # (H, 4H)
    b1 = ((p["bih1"] + p["bhh1"]) * gscale).reshape(1, H4)
    fc1w = p["fc1_w"].T                                           # (H, F1)
    fc1b = p["fc1_b"].reshape(1, F1)
    fc2w = p["fc2_w"].T                                           # (F1, O)
    fc2b = p["fc2_b"].reshape(1, O)

    args = (x_tm, wih0, whh0, b0, wih1, whh1, b1, fc1w, fc1b, fc2w, fc2b)

    flops = int(
        2 * T * B * D * 4 * H          # layer-0 input projection (batched)
        + 2 * T * B * H * 4 * H        # layer-0 recurrence
        + 2 * T * B * H * 4 * H        # layer-1 input projection (batched)
        + 2 * T * B * H * 4 * H        # layer-1 recurrence
        + 2 * B * H * F1 + 2 * B * F1 * O   # head
        + 12 * T * B * 4 * H)          # elementwise cell updates
    transcendentals = int(2 * T * 2 * B * 4 * H + B * F1)   # 2 tanh tiles/step + head sigmoid
    bytes_accessed = int(sum(a.size * 4 for a in args) + B * O * 4)

    vmem = pltpu.MemorySpace.VMEM
    return pl.pallas_call(
        lstm_model_kernel,
        out_shape=jax.ShapeDtypeStruct((B, O), jnp.float32),
        in_specs=[pl.BlockSpec(memory_space=vmem) for _ in range(len(args))],
        out_specs=pl.BlockSpec(memory_space=vmem),
        cost_estimate=pl.CostEstimate(flops=flops,
                                      transcendentals=transcendentals,
                                      bytes_accessed=bytes_accessed),
    )(*args)


def lstm_model_reference(x, p):
    """Pure-JAX reference mirroring the PyTorch eval-mode semantics."""
    B, T, D = x.shape
    H = p["whh0"].shape[1]

    def run_layer(xs, wih, whh, bih, bhh):
        def step(carry, x_t):
            h, c = carry
            g = x_t @ wih.T + h @ whh.T + bih + bhh
            i = jax.nn.sigmoid(g[:, 0:H])
            f = jax.nn.sigmoid(g[:, H:2 * H])
            gg = jnp.tanh(g[:, 2 * H:3 * H])
            o = jax.nn.sigmoid(g[:, 3 * H:4 * H])
            c = f * c + i * gg
            h = o * jnp.tanh(c)
            return (h, c), h
        init = (jnp.zeros((B, H), jnp.float32), jnp.zeros((B, H), jnp.float32))
        _, hs = lax.scan(step, init, xs)
        return hs                                      # (T, B, H)

    xs = jnp.transpose(x, (1, 0, 2))
    hs0 = run_layer(xs, p["wih0"], p["whh0"], p["bih0"], p["bhh0"])
    hs1 = run_layer(hs0, p["wih1"], p["whh1"], p["bih1"], p["bhh1"])
    z = jax.nn.sigmoid(hs1[-1] @ p["fc1_w"].T + p["fc1_b"])
    z = z @ p["fc2_w"].T + p["fc2_b"]
    return z + jnp.mean(x, axis=1)


if __name__ == "__main__":
    # Small shapes consistent with the module:
    #   batch=8, seq=8, input_size=16, hidden_size=32, fc_1=64,
    #   output_size=16 (must equal input_size so `o + m` broadcasts), num_layers=2.
    B, T = 8, 8
    input_size, hidden_size, fc1_size, output_size = 16, 32, 64, 16

    key = jax.random.PRNGKey(0)
    kx, kp = jax.random.split(key)
    x = jax.random.normal(kx, (B, T, input_size), jnp.float32)
    params = init_params(kp, input_size, hidden_size, fc1_size, output_size)

    out = jax.jit(lstm_model_forward)(x, params)
    out = jax.block_until_ready(out)
    assert out.shape == (B, output_size) and out.dtype == jnp.float32

    ref = jax.jit(lstm_model_reference)(x, params)
    ref = jax.block_until_ready(ref)
    err = float(jnp.max(jnp.abs(out - ref)))
    assert err < 2e-2, f"kernel vs reference mismatch: max abs err = {err}"
    print("KERNEL_OK")
</pallas_src>

<mosaic_0001>
module attributes {stable_mosaic.version = 11 : i64} {
  func.func @lstm_model_kernel(%arg0: memref<8x8x16xf32, #tpu.memory_space<vmem>>, %arg1: memref<16x128xf32, #tpu.memory_space<vmem>>, %arg2: memref<32x128xf32, #tpu.memory_space<vmem>>, %arg3: memref<1x128xf32, #tpu.memory_space<vmem>>, %arg4: memref<32x128xf32, #tpu.memory_space<vmem>>, %arg5: memref<32x128xf32, #tpu.memory_space<vmem>>, %arg6: memref<1x128xf32, #tpu.memory_space<vmem>>, %arg7: memref<32x64xf32, #tpu.memory_space<vmem>>, %arg8: memref<1x64xf32, #tpu.memory_space<vmem>>, %arg9: memref<64x16xf32, #tpu.memory_space<vmem>>, %arg10: memref<1x16xf32, #tpu.memory_space<vmem>>, %arg11: memref<8x16xf32, #tpu.memory_space<vmem>>) attributes {dimension_semantics = [], scalar_prefetch = 0 : i64, scratch_operands = 0 : i64, tpu.core_type = #tpu.core_type<tc>} {
    %c0 = arith.constant 0 : index
    %c0_0 = arith.constant 0 : index
    %c0_1 = arith.constant 0 : index
    %0 = vector.load %arg0[%c0, %c0_0, %c0_1] : memref<8x8x16xf32, #tpu.memory_space<vmem>>, vector<8x8x16xf32>
    %1 = tpu.iota {dimensions = array<i32: 1>} : vector<8x128xi32>
    %c64_i32 = arith.constant 64 : i32
    %2 = vector.broadcast %c64_i32 : i32 to vector<8x128xi32>
    %3 = arith.cmpi sge, %1, %2 : vector<8x128xi32>
    %c96_i32 = arith.constant 96 : i32
    %4 = vector.broadcast %c96_i32 : i32 to vector<8x128xi32>
    %5 = arith.cmpi slt, %1, %4 : vector<8x128xi32>
    %6 = arith.andi %3, %5 : vector<8x128xi1>
    %cst = arith.constant 1.000000e+00 : f32
    %cst_2 = arith.constant 5.000000e-01 : f32
    %7 = vector.broadcast %cst : f32 to vector<8x128xf32>
    %8 = vector.broadcast %cst_2 : f32 to vector<8x128xf32>
    %9 = arith.select %6, %7, %8 : vector<8x128xi1>, vector<8x128xf32>
    %cst_3 = arith.constant 0.000000e+00 : f32
    %cst_4 = arith.constant 5.000000e-01 : f32
    %10 = vector.broadcast %cst_3 : f32 to vector<8x128xf32>
    %11 = vector.broadcast %cst_4 : f32 to vector<8x128xf32>
    %12 = arith.select %6, %10, %11 : vector<8x128xi1>, vector<8x128xf32>
    %13 = vector.shape_cast %0 : vector<8x8x16xf32> to vector<64x16xf32>
    %c0_5 = arith.constant 0 : index
    %c0_6 = arith.constant 0 : index
    %14 = vector.load %arg1[%c0_5, %c0_6] : memref<16x128xf32, #tpu.memory_space<vmem>>, vector<16x128xf32>
    %cst_7 = arith.constant dense<0.000000e+00> : vector<64x128xf32>
    %15 = tpu.matmul %13, %14, %cst_7 {dimension_numbers = #tpu.dot_dimension_numbers<[1], [0], [0], [1], [0, 0, 1, 1], [], []>} : vector<64x16xf32>, vector<16x128xf32>, vector<64x128xf32> -> vector<64x128xf32>
    %c0_8 = arith.constant 0 : index
    %c0_9 = arith.constant 0 : index
    %16 = vector.load %arg3[%c0_8, %c0_9] : memref<1x128xf32, #tpu.memory_space<vmem>>, vector<1x128xf32>
    %17 = vector.broadcast %16 : vector<1x128xf32> to vector<64x128xf32>
    %18 = arith.addf %15, %17 : vector<64x128xf32>
    %c0_10 = arith.constant 0 : index
    %c0_11 = arith.constant 0 : index
    %19 = vector.load %arg2[%c0_10, %c0_11] : memref<32x128xf32, #tpu.memory_space<vmem>>, vector<32x128xf32>
    %cst_12 = arith.constant 0.000000e+00 : f32
    %20 = vector.broadcast %cst_12 : f32 to vector<8x32xf32>
    %cst_13 = arith.constant 0.000000e+00 : f32
    %21 = vector.broadcast %cst_13 : f32 to vector<8x128xf32>
    %22 = vector.extract_strided_slice %18 {offsets = [0, 0], sizes = [8, 128], strides = [1, 1]} : vector<64x128xf32> to vector<8x128xf32>
    %cst_14 = arith.constant dense<0.000000e+00> : vector<8x128xf32>
    %23 = tpu.matmul %20, %19, %cst_14 {dimension_numbers = #tpu.dot_dimension_numbers<[1], [0], [0], [1], [0, 0, 1, 1], [], []>} : vector<8x32xf32>, vector<32x128xf32>, vector<8x128xf32> -> vector<8x128xf32>
    %24 = arith.addf %22, %23 : vector<8x128xf32>
    %25 = math.tanh %24 : vector<8x128xf32>
    %26 = arith.mulf %25, %9 : vector<8x128xf32>
    %27 = arith.addf %26, %12 : vector<8x128xf32>
    %c96_i32_15 = arith.constant 96 : i32
    %28 = tpu.dynamic_rotate %27 by %c96_i32_15 dim 1 : vector<8x128xf32>, i32 -> vector<8x128xf32>
    %c64_i32_16 = arith.constant 64 : i32
    %29 = tpu.dynamic_rotate %27 by %c64_i32_16 dim 1 : vector<8x128xf32>, i32 -> vector<8x128xf32>
    %c32_i32 = arith.constant 32 : i32
    %30 = tpu.dynamic_rotate %27 by %c32_i32 dim 1 : vector<8x128xf32>, i32 -> vector<8x128xf32>
    %31 = arith.mulf %28, %21 : vector<8x128xf32>
    %32 = arith.mulf %27, %29 : vector<8x128xf32>
    %33 = arith.addf %31, %32 : vector<8x128xf32>
    %34 = math.tanh %33 : vector<8x128xf32>
    %35 = arith.mulf %30, %34 : vector<8x128xf32>
    %36 = vector.extract_strided_slice %35 {offsets = [0, 0], sizes = [8, 32], strides = [1, 1]} : vector<8x128xf32> to vector<8x32xf32>
    %37 = vector.extract_strided_slice %18 {offsets = [8, 0], sizes = [8, 128], strides = [1, 1]} : vector<64x128xf32> to vector<8x128xf32>
    %cst_17 = arith.constant dense<0.000000e+00> : vector<8x128xf32>
    %38 = tpu.matmul %36, %19, %cst_17 {dimension_numbers = #tpu.dot_dimension_numbers<[1], [0], [0], [1], [0, 0, 1, 1], [], []>} : vector<8x32xf32>, vector<32x128xf32>, vector<8x128xf32> -> vector<8x128xf32>
    %39 = arith.addf %37, %38 : vector<8x128xf32>
    %40 = math.tanh %39 : vector<8x128xf32>
    %41 = arith.mulf %40, %9 : vector<8x128xf32>
    %42 = arith.addf %41, %12 : vector<8x128xf32>
    %c96_i32_18 = arith.constant 96 : i32
    %43 = tpu.dynamic_rotate %42 by %c96_i32_18 dim 1 : vector<8x128xf32>, i32 -> vector<8x128xf32>
    %c64_i32_19 = arith.constant 64 : i32
    %44 = tpu.dynamic_rotate %42 by %c64_i32_19 dim 1 : vector<8x128xf32>, i32 -> vector<8x128xf32>
    %c32_i32_20 = arith.constant 32 : i32
    %45 = tpu.dynamic_rotate %42 by %c32_i32_20 dim 1 : vector<8x128xf32>, i32 -> vector<8x128xf32>
    %46 = arith.mulf %43, %33 : vector<8x128xf32>
    %47 = arith.mulf %42, %44 : vector<8x128xf32>
    %48 = arith.addf %46, %47 : vector<8x128xf32>
    %49 = math.tanh %48 : vector<8x128xf32>
    %50 = arith.mulf %45, %49 : vector<8x128xf32>
    %51 = vector.extract_strided_slice %50 {offsets = [0, 0], sizes = [8, 32], strides = [1, 1]} : vector<8x128xf32> to vector<8x32xf32>
    %52 = vector.extract_strided_slice %18 {offsets = [16, 0], sizes = [8, 128], strides = [1, 1]} : vector<64x128xf32> to vector<8x128xf32>
    %cst_21 = arith.constant dense<0.000000e+00> : vector<8x128xf32>
    %53 = tpu.matmul %51, %19, %cst_21 {dimension_numbers = #tpu.dot_dimension_numbers<[1], [0], [0], [1], [0, 0, 1, 1], [], []>} : vector<8x32xf32>, vector<32x128xf32>, vector<8x128xf32> -> vector<8x128xf32>
    %54 = arith.addf %52, %53 : vector<8x128xf32>
    %55 = math.tanh %54 : vector<8x128xf32>
    %56 = arith.mulf %55, %9 : vector<8x128xf32>
    %57 = arith.addf %56, %12 : vector<8x128xf32>
    %c96_i32_22 = arith.constant 96 : i32
    %58 = tpu.dynamic_rotate %57 by %c96_i32_22 dim 1 : vector<8x128xf32>, i32 -> vector<8x128xf32>
    %c64_i32_23 = arith.constant 64 : i32
    %59 = tpu.dynamic_rotate %57 by %c64_i32_23 dim 1 : vector<8x128xf32>, i32 -> vector<8x128xf32>
    %c32_i32_24 = arith.constant 32 : i32
    %60 = tpu.dynamic_rotate %57 by %c32_i32_24 dim 1 : vector<8x128xf32>, i32 -> vector<8x128xf32>
    %61 = arith.mulf %58, %48 : vector<8x128xf32>
    %62 = arith.mulf %57, %59 : vector<8x128xf32>
    %63 = arith.addf %61, %62 : vector<8x128xf32>
    %64 = math.tanh %63 : vector<8x128xf32>
    %65 = arith.mulf %60, %64 : vector<8x128xf32>
    %66 = vector.extract_strided_slice %65 {offsets = [0, 0], sizes = [8, 32], strides = [1, 1]} : vector<8x128xf32> to vector<8x32xf32>
    %67 = vector.extract_strided_slice %18 {offsets = [24, 0], sizes = [8, 128], strides = [1, 1]} : vector<64x128xf32> to vector<8x128xf32>
    %cst_25 = arith.constant dense<0.000000e+00> : vector<8x128xf32>
    %68 = tpu.matmul %66, %19, %cst_25 {dimension_numbers = #tpu.dot_dimension_numbers<[1], [0], [0], [1], [0, 0, 1, 1], [], []>} : vector<8x32xf32>, vector<32x128xf32>, vector<8x128xf32> -> vector<8x128xf32>
    %69 = arith.addf %67, %68 : vector<8x128xf32>
    %70 = math.tanh %69 : vector<8x128xf32>
    %71 = arith.mulf %70, %9 : vector<8x128xf32>
    %72 = arith.addf %71, %12 : vector<8x128xf32>
    %c96_i32_26 = arith.constant 96 : i32
    %73 = tpu.dynamic_rotate %72 by %c96_i32_26 dim 1 : vector<8x128xf32>, i32 -> vector<8x128xf32>
    %c64_i32_27 = arith.constant 64 : i32
    %74 = tpu.dynamic_rotate %72 by %c64_i32_27 dim 1 : vector<8x128xf32>, i32 -> vector<8x128xf32>
    %c32_i32_28 = arith.constant 32 : i32
    %75 = tpu.dynamic_rotate %72 by %c32_i32_28 dim 1 : vector<8x128xf32>, i32 -> vector<8x128xf32>
    %76 = arith.mulf %73, %63 : vector<8x128xf32>
    %77 = arith.mulf %72, %74 : vector<8x128xf32>
    %78 = arith.addf %76, %77 : vector<8x128xf32>
    %79 = math.tanh %78 : vector<8x128xf32>
    %80 = arith.mulf %75, %79 : vector<8x128xf32>
    %81 = vector.extract_strided_slice %80 {offsets = [0, 0], sizes = [8, 32], strides = [1, 1]} : vector<8x128xf32> to vector<8x32xf32>
    %82 = vector.extract_strided_slice %18 {offsets = [32, 0], sizes = [8, 128], strides = [1, 1]} : vector<64x128xf32> to vector<8x128xf32>
    %cst_29 = arith.constant dense<0.000000e+00> : vector<8x128xf32>
    %83 = tpu.matmul %81, %19, %cst_29 {dimension_numbers = #tpu.dot_dimension_numbers<[1], [0], [0], [1], [0, 0, 1, 1], [], []>} : vector<8x32xf32>, vector<32x128xf32>, vector<8x128xf32> -> vector<8x128xf32>
    %84 = arith.addf %82, %83 : vector<8x128xf32>
    %85 = math.tanh %84 : vector<8x128xf32>
    %86 = arith.mulf %85, %9 : vector<8x128xf32>
    %87 = arith.addf %86, %12 : vector<8x128xf32>
    %c96_i32_30 = arith.constant 96 : i32
    %88 = tpu.dynamic_rotate %87 by %c96_i32_30 dim 1 : vector<8x128xf32>, i32 -> vector<8x128xf32>
    %c64_i32_31 = arith.constant 64 : i32
    %89 = tpu.dynamic_rotate %87 by %c64_i32_31 dim 1 : vector<8x128xf32>, i32 -> vector<8x128xf32>
    %c32_i32_32 = arith.constant 32 : i32
    %90 = tpu.dynamic_rotate %87 by %c32_i32_32 dim 1 : vector<8x128xf32>, i32 -> vector<8x128xf32>
    %91 = arith.mulf %88, %78 : vector<8x128xf32>
    %92 = arith.mulf %87, %89 : vector<8x128xf32>
    %93 = arith.addf %91, %92 : vector<8x128xf32>
    %94 = math.tanh %93 : vector<8x128xf32>
    %95 = arith.mulf %90, %94 : vector<8x128xf32>
    %96 = vector.extract_strided_slice %95 {offsets = [0, 0], sizes = [8, 32], strides = [1, 1]} : vector<8x128xf32> to vector<8x32xf32>
    %97 = vector.extract_strided_slice %18 {offsets = [40, 0], sizes = [8, 128], strides = [1, 1]} : vector<64x128xf32> to vector<8x128xf32>
    %cst_33 = arith.constant dense<0.000000e+00> : vector<8x128xf32>
    %98 = tpu.matmul %96, %19, %cst_33 {dimension_numbers = #tpu.dot_dimension_numbers<[1], [0], [0], [1], [0, 0, 1, 1], [], []>} : vector<8x32xf32>, vector<32x128xf32>, vector<8x128xf32> -> vector<8x128xf32>
    %99 = arith.addf %97, %98 : vector<8x128xf32>
    %100 = math.tanh %99 : vector<8x128xf32>
    %101 = arith.mulf %100, %9 : vector<8x128xf32>
    %102 = arith.addf %101, %12 : vector<8x128xf32>
    %c96_i32_34 = arith.constant 96 : i32
    %103 = tpu.dynamic_rotate %102 by %c96_i32_34 dim 1 : vector<8x128xf32>, i32 -> vector<8x128xf32>
    %c64_i32_35 = arith.constant 64 : i32
    %104 = tpu.dynamic_rotate %102 by %c64_i32_35 dim 1 : vector<8x128xf32>, i32 -> vector<8x128xf32>
    %c32_i32_36 = arith.constant 32 : i32
    %105 = tpu.dynamic_rotate %102 by %c32_i32_36 dim 1 : vector<8x128xf32>, i32 -> vector<8x128xf32>
    %106 = arith.mulf %103, %93 : vector<8x128xf32>
    %107 = arith.mulf %102, %104 : vector<8x128xf32>
    %108 = arith.addf %106, %107 : vector<8x128xf32>
    %109 = math.tanh %108 : vector<8x128xf32>
    %110 = arith.mulf %105, %109 : vector<8x128xf32>
    %111 = vector.extract_strided_slice %110 {offsets = [0, 0], sizes = [8, 32], strides = [1, 1]} : vector<8x128xf32> to vector<8x32xf32>
    %112 = vector.extract_strided_slice %18 {offsets = [48, 0], sizes = [8, 128], strides = [1, 1]} : vector<64x128xf32> to vector<8x128xf32>
    %cst_37 = arith.constant dense<0.000000e+00> : vector<8x128xf32>
    %113 = tpu.matmul %111, %19, %cst_37 {dimension_numbers = #tpu.dot_dimension_numbers<[1], [0], [0], [1], [0, 0, 1, 1], [], []>} : vector<8x32xf32>, vector<32x128xf32>, vector<8x128xf32> -> vector<8x128xf32>
    %114 = arith.addf %112, %113 : vector<8x128xf32>
    %115 = math.tanh %114 : vector<8x128xf32>
    %116 = arith.mulf %115, %9 : vector<8x128xf32>
    %117 = arith.addf %116, %12 : vector<8x128xf32>
    %c96_i32_38 = arith.constant 96 : i32
    %118 = tpu.dynamic_rotate %117 by %c96_i32_38 dim 1 : vector<8x128xf32>, i32 -> vector<8x128xf32>
    %c64_i32_39 = arith.constant 64 : i32
    %119 = tpu.dynamic_rotate %117 by %c64_i32_39 dim 1 : vector<8x128xf32>, i32 -> vector<8x128xf32>
    %c32_i32_40 = arith.constant 32 : i32
    %120 = tpu.dynamic_rotate %117 by %c32_i32_40 dim 1 : vector<8x128xf32>, i32 -> vector<8x128xf32>
    %121 = arith.mulf %118, %108 : vector<8x128xf32>
    %122 = arith.mulf %117, %119 : vector<8x128xf32>
    %123 = arith.addf %121, %122 : vector<8x128xf32>
    %124 = math.tanh %123 : vector<8x128xf32>
    %125 = arith.mulf %120, %124 : vector<8x128xf32>
    %126 = vector.extract_strided_slice %125 {offsets = [0, 0], sizes = [8, 32], strides = [1, 1]} : vector<8x128xf32> to vector<8x32xf32>
    %127 = vector.extract_strided_slice %18 {offsets = [56, 0], sizes = [8, 128], strides = [1, 1]} : vector<64x128xf32> to vector<8x128xf32>
    %cst_41 = arith.constant dense<0.000000e+00> : vector<8x128xf32>
    %128 = tpu.matmul %126, %19, %cst_41 {dimension_numbers = #tpu.dot_dimension_numbers<[1], [0], [0], [1], [0, 0, 1, 1], [], []>} : vector<8x32xf32>, vector<32x128xf32>, vector<8x128xf32> -> vector<8x128xf32>
    %129 = arith.addf %127, %128 : vector<8x128xf32>
    %130 = math.tanh %129 : vector<8x128xf32>
    %131 = arith.mulf %130, %9 : vector<8x128xf32>
    %132 = arith.addf %131, %12 : vector<8x128xf32>
    %c96_i32_42 = arith.constant 96 : i32
    %133 = tpu.dynamic_rotate %132 by %c96_i32_42 dim 1 : vector<8x128xf32>, i32 -> vector<8x128xf32>
    %c64_i32_43 = arith.constant 64 : i32
    %134 = tpu.dynamic_rotate %132 by %c64_i32_43 dim 1 : vector<8x128xf32>, i32 -> vector<8x128xf32>
    %c32_i32_44 = arith.constant 32 : i32
    %135 = tpu.dynamic_rotate %132 by %c32_i32_44 dim 1 : vector<8x128xf32>, i32 -> vector<8x128xf32>
    %136 = arith.mulf %133, %123 : vector<8x128xf32>
    %137 = arith.mulf %132, %134 : vector<8x128xf32>
    %138 = arith.addf %136, %137 : vector<8x128xf32>
    %139 = math.tanh %138 : vector<8x128xf32>
    %140 = arith.mulf %135, %139 : vector<8x128xf32>
    %141 = vector.extract_strided_slice %140 {offsets = [0, 0], sizes = [8, 32], strides = [1, 1]} : vector<8x128xf32> to vector<8x32xf32>
    %142 = tpu.concatenate %36, %51, %66, %81, %96, %111, %126, %141 in 0 : vector<8x32xf32>, vector<8x32xf32>, vector<8x32xf32>, vector<8x32xf32>, vector<8x32xf32>, vector<8x32xf32>, vector<8x32xf32>, vector<8x32xf32> -> vector<64x32xf32>
    %c0_45 = arith.constant 0 : index
    %c0_46 = arith.constant 0 : index
    %143 = vector.load %arg4[%c0_45, %c0_46] : memref<32x128xf32, #tpu.memory_space<vmem>>, vector<32x128xf32>
    %cst_47 = arith.constant dense<0.000000e+00> : vector<64x128xf32>
    %144 = tpu.matmul %142, %143, %cst_47 {dimension_numbers = #tpu.dot_dimension_numbers<[1], [0], [0], [1], [0, 0, 1, 1], [], []>} : vector<64x32xf32>, vector<32x128xf32>, vector<64x128xf32> -> vector<64x128xf32>
    %c0_48 = arith.constant 0 : index
    %c0_49 = arith.constant 0 : index
    %145 = vector.load %arg6[%c0_48, %c0_49] : memref<1x128xf32, #tpu.memory_space<vmem>>, vector<1x128xf32>
    %146 = vector.broadcast %145 : vector<1x128xf32> to vector<64x128xf32>
    %147 = arith.addf %144, %146 : vector<64x128xf32>
    %c0_50 = arith.constant 0 : index
    %c0_51 = arith.constant 0 : index
    %148 = vector.load %arg5[%c0_50, %c0_51] : memref<32x128xf32, #tpu.memory_space<vmem>>, vector<32x128xf32>
    %cst_52 = arith.constant 0.000000e+00 : f32
    %149 = vector.broadcast %cst_52 : f32 to vector<8x32xf32>
    %cst_53 = arith.constant 0.000000e+00 : f32
    %150 = vector.broadcast %cst_53 : f32 to vector<8x128xf32>
    %151 = vector.extract_strided_slice %147 {offsets = [0, 0], sizes = [8, 128], strides = [1, 1]} : vector<64x128xf32> to vector<8x128xf32>
    %cst_54 = arith.constant dense<0.000000e+00> : vector<8x128xf32>
    %152 = tpu.matmul %149, %148, %cst_54 {dimension_numbers = #tpu.dot_dimension_numbers<[1], [0], [0], [1], [0, 0, 1, 1], [], []>} : vector<8x32xf32>, vector<32x128xf32>, vector<8x128xf32> -> vector<8x128xf32>
    %153 = arith.addf %151, %152 : vector<8x128xf32>
    %154 = math.tanh %153 : vector<8x128xf32>
    %155 = arith.mulf %154, %9 : vector<8x128xf32>
    %156 = arith.addf %155, %12 : vector<8x128xf32>
    %c96_i32_55 = arith.constant 96 : i32
    %157 = tpu.dynamic_rotate %156 by %c96_i32_55 dim 1 : vector<8x128xf32>, i32 -> vector<8x128xf32>
    %c64_i32_56 = arith.constant 64 : i32
    %158 = tpu.dynamic_rotate %156 by %c64_i32_56 dim 1 : vector<8x128xf32>, i32 -> vector<8x128xf32>
    %c32_i32_57 = arith.constant 32 : i32
    %159 = tpu.dynamic_rotate %156 by %c32_i32_57 dim 1 : vector<8x128xf32>, i32 -> vector<8x128xf32>
    %160 = arith.mulf %157, %150 : vector<8x128xf32>
    %161 = arith.mulf %156, %158 : vector<8x128xf32>
    %162 = arith.addf %160, %161 : vector<8x128xf32>
    %163 = math.tanh %162 : vector<8x128xf32>
    %164 = arith.mulf %159, %163 : vector<8x128xf32>
    %165 = vector.extract_strided_slice %164 {offsets = [0, 0], sizes = [8, 32], strides = [1, 1]} : vector<8x128xf32> to vector<8x32xf32>
    %166 = vector.extract_strided_slice %147 {offsets = [8, 0], sizes = [8, 128], strides = [1, 1]} : vector<64x128xf32> to vector<8x128xf32>
    %cst_58 = arith.constant dense<0.000000e+00> : vector<8x128xf32>
    %167 = tpu.matmul %165, %148, %cst_58 {dimension_numbers = #tpu.dot_dimension_numbers<[1], [0], [0], [1], [0, 0, 1, 1], [], []>} : vector<8x32xf32>, vector<32x128xf32>, vector<8x128xf32> -> vector<8x128xf32>
    %168 = arith.addf %166, %167 : vector<8x128xf32>
    %169 = math.tanh %168 : vector<8x128xf32>
    %170 = arith.mulf %169, %9 : vector<8x128xf32>
    %171 = arith.addf %170, %12 : vector<8x128xf32>
    %c96_i32_59 = arith.constant 96 : i32
    %172 = tpu.dynamic_rotate %171 by %c96_i32_59 dim 1 : vector<8x128xf32>, i32 -> vector<8x128xf32>
    %c64_i32_60 = arith.constant 64 : i32
    %173 = tpu.dynamic_rotate %171 by %c64_i32_60 dim 1 : vector<8x128xf32>, i32 -> vector<8x128xf32>
    %c32_i32_61 = arith.constant 32 : i32
    %174 = tpu.dynamic_rotate %171 by %c32_i32_61 dim 1 : vector<8x128xf32>, i32 -> vector<8x128xf32>
    %175 = arith.mulf %172, %162 : vector<8x128xf32>
    %176 = arith.mulf %171, %173 : vector<8x128xf32>
    %177 = arith.addf %175, %176 : vector<8x128xf32>
    %178 = math.tanh %177 : vector<8x128xf32>
    %179 = arith.mulf %174, %178 : vector<8x128xf32>
    %180 = vector.extract_strided_slice %179 {offsets = [0, 0], sizes = [8, 32], strides = [1, 1]} : vector<8x128xf32> to vector<8x32xf32>
    %181 = vector.extract_strided_slice %147 {offsets = [16, 0], sizes = [8, 128], strides = [1, 1]} : vector<64x128xf32> to vector<8x128xf32>
    %cst_62 = arith.constant dense<0.000000e+00> : vector<8x128xf32>
    %182 = tpu.matmul %180, %148, %cst_62 {dimension_numbers = #tpu.dot_dimension_numbers<[1], [0], [0], [1], [0, 0, 1, 1], [], []>} : vector<8x32xf32>, vector<32x128xf32>, vector<8x128xf32> -> vector<8x128xf32>
    %183 = arith.addf %181, %182 : vector<8x128xf32>
    %184 = math.tanh %183 : vector<8x128xf32>
    %185 = arith.mulf %184, %9 : vector<8x128xf32>
    %186 = arith.addf %185, %12 : vector<8x128xf32>
    %c96_i32_63 = arith.constant 96 : i32
    %187 = tpu.dynamic_rotate %186 by %c96_i32_63 dim 1 : vector<8x128xf32>, i32 -> vector<8x128xf32>
    %c64_i32_64 = arith.constant 64 : i32
    %188 = tpu.dynamic_rotate %186 by %c64_i32_64 dim 1 : vector<8x128xf32>, i32 -> vector<8x128xf32>
    %c32_i32_65 = arith.constant 32 : i32
    %189 = tpu.dynamic_rotate %186 by %c32_i32_65 dim 1 : vector<8x128xf32>, i32 -> vector<8x128xf32>
    %190 = arith.mulf %187, %177 : vector<8x128xf32>
    %191 = arith.mulf %186, %188 : vector<8x128xf32>
    %192 = arith.addf %190, %191 : vector<8x128xf32>
    %193 = math.tanh %192 : vector<8x128xf32>
    %194 = arith.mulf %189, %193 : vector<8x128xf32>
    %195 = vector.extract_strided_slice %194 {offsets = [0, 0], sizes = [8, 32], strides = [1, 1]} : vector<8x128xf32> to vector<8x32xf32>
    %196 = vector.extract_strided_slice %147 {offsets = [24, 0], sizes = [8, 128], strides = [1, 1]} : vector<64x128xf32> to vector<8x128xf32>
    %cst_66 = arith.constant dense<0.000000e+00> : vector<8x128xf32>
    %197 = tpu.matmul %195, %148, %cst_66 {dimension_numbers = #tpu.dot_dimension_numbers<[1], [0], [0], [1], [0, 0, 1, 1], [], []>} : vector<8x32xf32>, vector<32x128xf32>, vector<8x128xf32> -> vector<8x128xf32>
    %198 = arith.addf %196, %197 : vector<8x128xf32>
    %199 = math.tanh %198 : vector<8x128xf32>
    %200 = arith.mulf %199, %9 : vector<8x128xf32>
    %201 = arith.addf %200, %12 : vector<8x128xf32>
    %c96_i32_67 = arith.constant 96 : i32
    %202 = tpu.dynamic_rotate %201 by %c96_i32_67 dim 1 : vector<8x128xf32>, i32 -> vector<8x128xf32>
    %c64_i32_68 = arith.constant 64 : i32
    %203 = tpu.dynamic_rotate %201 by %c64_i32_68 dim 1 : vector<8x128xf32>, i32 -> vector<8x128xf32>
    %c32_i32_69 = arith.constant 32 : i32
    %204 = tpu.dynamic_rotate %201 by %c32_i32_69 dim 1 : vector<8x128xf32>, i32 -> vector<8x128xf32>
    %205 = arith.mulf %202, %192 : vector<8x128xf32>
    %206 = arith.mulf %201, %203 : vector<8x128xf32>
    %207 = arith.addf %205, %206 : vector<8x128xf32>
    %208 = math.tanh %207 : vector<8x128xf32>
    %209 = arith.mulf %204, %208 : vector<8x128xf32>
    %210 = vector.extract_strided_slice %209 {offsets = [0, 0], sizes = [8, 32], strides = [1, 1]} : vector<8x128xf32> to vector<8x32xf32>
    %211 = vector.extract_strided_slice %147 {offsets = [32, 0], sizes = [8, 128], strides = [1, 1]} : vector<64x128xf32> to vector<8x128xf32>
    %cst_70 = arith.constant dense<0.000000e+00> : vector<8x128xf32>
    %212 = tpu.matmul %210, %148, %cst_70 {dimension_numbers = #tpu.dot_dimension_numbers<[1], [0], [0], [1], [0, 0, 1, 1], [], []>} : vector<8x32xf32>, vector<32x128xf32>, vector<8x128xf32> -> vector<8x128xf32>
    %213 = arith.addf %211, %212 : vector<8x128xf32>
    %214 = math.tanh %213 : vector<8x128xf32>
    %215 = arith.mulf %214, %9 : vector<8x128xf32>
    %216 = arith.addf %215, %12 : vector<8x128xf32>
    %c96_i32_71 = arith.constant 96 : i32
    %217 = tpu.dynamic_rotate %216 by %c96_i32_71 dim 1 : vector<8x128xf32>, i32 -> vector<8x128xf32>
    %c64_i32_72 = arith.constant 64 : i32
    %218 = tpu.dynamic_rotate %216 by %c64_i32_72 dim 1 : vector<8x128xf32>, i32 -> vector<8x128xf32>
    %c32_i32_73 = arith.constant 32 : i32
    %219 = tpu.dynamic_rotate %216 by %c32_i32_73 dim 1 : vector<8x128xf32>, i32 -> vector<8x128xf32>
    %220 = arith.mulf %217, %207 : vector<8x128xf32>
    %221 = arith.mulf %216, %218 : vector<8x128xf32>
    %222 = arith.addf %220, %221 : vector<8x128xf32>
    %223 = math.tanh %222 : vector<8x128xf32>
    %224 = arith.mulf %219, %223 : vector<8x128xf32>
    %225 = vector.extract_strided_slice %224 {offsets = [0, 0], sizes = [8, 32], strides = [1, 1]} : vector<8x128xf32> to vector<8x32xf32>
    %226 = vector.extract_strided_slice %147 {offsets = [40, 0], sizes = [8, 128], strides = [1, 1]} : vector<64x128xf32> to vector<8x128xf32>
    %cst_74 = arith.constant dense<0.000000e+00> : vector<8x128xf32>
    %227 = tpu.matmul %225, %148, %cst_74 {dimension_numbers = #tpu.dot_dimension_numbers<[1], [0], [0], [1], [0, 0, 1, 1], [], []>} : vector<8x32xf32>, vector<32x128xf32>, vector<8x128xf32> -> vector<8x128xf32>
    %228 = arith.addf %226, %227 : vector<8x128xf32>
    %229 = math.tanh %228 : vector<8x128xf32>
    %230 = arith.mulf %229, %9 : vector<8x128xf32>
    %231 = arith.addf %230, %12 : vector<8x128xf32>
    %c96_i32_75 = arith.constant 96 : i32
    %232 = tpu.dynamic_rotate %231 by %c96_i32_75 dim 1 : vector<8x128xf32>, i32 -> vector<8x128xf32>
    %c64_i32_76 = arith.constant 64 : i32
    %233 = tpu.dynamic_rotate %231 by %c64_i32_76 dim 1 : vector<8x128xf32>, i32 -> vector<8x128xf32>
    %c32_i32_77 = arith.constant 32 : i32
    %234 = tpu.dynamic_rotate %231 by %c32_i32_77 dim 1 : vector<8x128xf32>, i32 -> vector<8x128xf32>
    %235 = arith.mulf %232, %222 : vector<8x128xf32>
    %236 = arith.mulf %231, %233 : vector<8x128xf32>
    %237 = arith.addf %235, %236 : vector<8x128xf32>
    %238 = math.tanh %237 : vector<8x128xf32>
    %239 = arith.mulf %234, %238 : vector<8x128xf32>
    %240 = vector.extract_strided_slice %239 {offsets = [0, 0], sizes = [8, 32], strides = [1, 1]} : vector<8x128xf32> to vector<8x32xf32>
    %241 = vector.extract_strided_slice %147 {offsets = [48, 0], sizes = [8, 128], strides = [1, 1]} : vector<64x128xf32> to vector<8x128xf32>
    %cst_78 = arith.constant dense<0.000000e+00> : vector<8x128xf32>
    %242 = tpu.matmul %240, %148, %cst_78 {dimension_numbers = #tpu.dot_dimension_numbers<[1], [0], [0], [1], [0, 0, 1, 1], [], []>} : vector<8x32xf32>, vector<32x128xf32>, vector<8x128xf32> -> vector<8x128xf32>
    %243 = arith.addf %241, %242 : vector<8x128xf32>
    %244 = math.tanh %243 : vector<8x128xf32>
    %245 = arith.mulf %244, %9 : vector<8x128xf32>
    %246 = arith.addf %245, %12 : vector<8x128xf32>
    %c96_i32_79 = arith.constant 96 : i32
    %247 = tpu.dynamic_rotate %246 by %c96_i32_79 dim 1 : vector<8x128xf32>, i32 -> vector<8x128xf32>
    %c64_i32_80 = arith.constant 64 : i32
    %248 = tpu.dynamic_rotate %246 by %c64_i32_80 dim 1 : vector<8x128xf32>, i32 -> vector<8x128xf32>
    %c32_i32_81 = arith.constant 32 : i32
    %249 = tpu.dynamic_rotate %246 by %c32_i32_81 dim 1 : vector<8x128xf32>, i32 -> vector<8x128xf32>
    %250 = arith.mulf %247, %237 : vector<8x128xf32>
    %251 = arith.mulf %246, %248 : vector<8x128xf32>
    %252 = arith.addf %250, %251 : vector<8x128xf32>
    %253 = math.tanh %252 : vector<8x128xf32>
    %254 = arith.mulf %249, %253 : vector<8x128xf32>
    %255 = vector.extract_strided_slice %254 {offsets = [0, 0], sizes = [8, 32], strides = [1, 1]} : vector<8x128xf32> to vector<8x32xf32>
    %256 = vector.extract_strided_slice %147 {offsets = [56, 0], sizes = [8, 128], strides = [1, 1]} : vector<64x128xf32> to vector<8x128xf32>
    %cst_82 = arith.constant dense<0.000000e+00> : vector<8x128xf32>
    %257 = tpu.matmul %255, %148, %cst_82 {dimension_numbers = #tpu.dot_dimension_numbers<[1], [0], [0], [1], [0, 0, 1, 1], [], []>} : vector<8x32xf32>, vector<32x128xf32>, vector<8x128xf32> -> vector<8x128xf32>
    %258 = arith.addf %256, %257 : vector<8x128xf32>
    %259 = math.tanh %258 : vector<8x128xf32>
    %260 = arith.mulf %259, %9 : vector<8x128xf32>
    %261 = arith.addf %260, %12 : vector<8x128xf32>
    %c96_i32_83 = arith.constant 96 : i32
    %262 = tpu.dynamic_rotate %261 by %c96_i32_83 dim 1 : vector<8x128xf32>, i32 -> vector<8x128xf32>
    %c64_i32_84 = arith.constant 64 : i32
    %263 = tpu.dynamic_rotate %261 by %c64_i32_84 dim 1 : vector<8x128xf32>, i32 -> vector<8x128xf32>
    %c32_i32_85 = arith.constant 32 : i32
    %264 = tpu.dynamic_rotate %261 by %c32_i32_85 dim 1 : vector<8x128xf32>, i32 -> vector<8x128xf32>
    %265 = arith.mulf %262, %252 : vector<8x128xf32>
    %266 = arith.mulf %261, %263 : vector<8x128xf32>
    %267 = arith.addf %265, %266 : vector<8x128xf32>
    %268 = math.tanh %267 : vector<8x128xf32>
    %269 = arith.mulf %264, %268 : vector<8x128xf32>
    %270 = vector.extract_strided_slice %269 {offsets = [0, 0], sizes = [8, 32], strides = [1, 1]} : vector<8x128xf32> to vector<8x32xf32>
    %c0_86 = arith.constant 0 : index
    %c0_87 = arith.constant 0 : index
    %271 = vector.load %arg7[%c0_86, %c0_87] : memref<32x64xf32, #tpu.memory_space<vmem>>, vector<32x64xf32>
    %cst_88 = arith.constant dense<0.000000e+00> : vector<8x64xf32>
    %272 = tpu.matmul %270, %271, %cst_88 {dimension_numbers = #tpu.dot_dimension_numbers<[1], [0], [0], [1], [0, 0, 1, 1], [], []>} : vector<8x32xf32>, vector<32x64xf32>, vector<8x64xf32> -> vector<8x64xf32>
    %c0_89 = arith.constant 0 : index
    %c0_90 = arith.constant 0 : index
    %273 = vector.load %arg8[%c0_89, %c0_90] : memref<1x64xf32, #tpu.memory_space<vmem>>, vector<1x64xf32>
    %274 = vector.broadcast %273 : vector<1x64xf32> to vector<8x64xf32>
    %275 = arith.addf %272, %274 : vector<8x64xf32>
    %276 = arith.negf %275 : vector<8x64xf32>
    %277 = math.exp %276 : vector<8x64xf32>
    %cst_91 = arith.constant 1.000000e+00 : f32
    %278 = vector.broadcast %cst_91 : f32 to vector<8x64xf32>
    %279 = arith.addf %278, %277 : vector<8x64xf32>
    %280 = arith.divf %278, %279 : vector<8x64xf32>
    %c0_92 = arith.constant 0 : index
    %c0_93 = arith.constant 0 : index
    %281 = vector.load %arg9[%c0_92, %c0_93] : memref<64x16xf32, #tpu.memory_space<vmem>>, vector<64x16xf32>
    %cst_94 = arith.constant dense<0.000000e+00> : vector<8x16xf32>
    %282 = tpu.matmul %280, %281, %cst_94 {dimension_numbers = #tpu.dot_dimension_numbers<[1], [0], [0], [1], [0, 0, 1, 1], [], []>} : vector<8x64xf32>, vector<64x16xf32>, vector<8x16xf32> -> vector<8x16xf32>
    %c0_95 = arith.constant 0 : index
    %c0_96 = arith.constant 0 : index
    %283 = vector.load %arg10[%c0_95, %c0_96] : memref<1x16xf32, #tpu.memory_space<vmem>>, vector<1x16xf32>
    %284 = vector.broadcast %283 : vector<1x16xf32> to vector<8x16xf32>
    %285 = arith.addf %282, %284 : vector<8x16xf32>
    %cst_97 = arith.constant dense<0.000000e+00> : vector<8x16xf32>
    %286 = vector.multi_reduction <add>, %0, %cst_97 [0] : vector<8x8x16xf32> to vector<8x16xf32>
    %cst_98 = arith.constant 8.000000e+00 : f32
    %287 = vector.broadcast %cst_98 : f32 to vector<8x16xf32>
    %288 = arith.divf %286, %287 : vector<8x16xf32>
    %289 = arith.addf %285, %288 : vector<8x16xf32>
    %c0_99 = arith.constant 0 : index
    %c0_100 = arith.constant 0 : index
    %290 = vector.load %arg11[%c0_99, %c0_100] : memref<8x16xf32, #tpu.memory_space<vmem>>, vector<8x16xf32>
    tpu.vector_store %arg11[%c0_99, %c0_100], %289 {strides = array<i32>} : memref<8x16xf32, #tpu.memory_space<vmem>>, vector<8x16xf32>,
    return
  }
}

</mosaic_0001>

<llo_original>
// kernel: lstm_model_forward.1
$region0: #{lstm_model_forward.1}
  #allocation0 [shape = 'u32[]', space=smem, size = 0x4, offset = 0x4, fixed_abs, tag = 'smem constant byte address 0x4 - core index']
  #allocation1 [shape = 'u32[144,128]{1,0:T(1,128)}', space=vmem, size = 0x12000, scoped, tag = 'internal scratch']
  %s0 = inlined_call_operand.vmem [shape: f32[8,8,16], index: 0, kind: input, shape index: {}]
  %s1 = inlined_call_operand.vmem [shape: f32[16,128], index: 1, kind: input, shape index: {}]
  %s2 = inlined_call_operand.vmem [shape: f32[32,128], index: 2, kind: input, shape index: {}]
  %s3 = inlined_call_operand.vmem [shape: f32[1,128], index: 3, kind: input, shape index: {}]
  %s4 = inlined_call_operand.vmem [shape: f32[32,128], index: 4, kind: input, shape index: {}]
  %s5 = inlined_call_operand.vmem [shape: f32[32,128], index: 5, kind: input, shape index: {}]
  %s6 = inlined_call_operand.vmem [shape: f32[1,128], index: 6, kind: input, shape index: {}]
  %s7 = inlined_call_operand.vmem [shape: f32[32,64], index: 7, kind: input, shape index: {}]
  %s8 = inlined_call_operand.vmem [shape: f32[1,64], index: 8, kind: input, shape index: {}]
  %s9 = inlined_call_operand.vmem [shape: f32[64,16], index: 9, kind: input, shape index: {}]
  %s10 = inlined_call_operand.vmem [shape: f32[1,16], index: 10, kind: input, shape index: {}]
  %s11 = inlined_call_operand.hbm [shape: f32[8,16], index: 11, kind: output, shape index: {}]
  %s12 = sld [smem:[#allocation0]]
  $region54: #{lstm_model_forward.1} parent=0
    _
  %s14 = ssub.s32 1, %s12
  %s15 = scalar_select 0, %s14, %s12
  $region1: #{lstm_model_forward.1} parent=0
    #allocation2 [shape = 'u8[4096]{0}', space=vmem, size = 0x1000, scoped, tag = 'output window, operand 0, single buffered']
    #allocation3 [shape = 's32[1]{0}', space=sflag, size = 0x4, scoped, tag = 'scoped memory for lstm_model_forward.1']
    %16 = vsyncpa [#allocation3], 0
    // Predicated region
    $region2: #{lstm_model_forward.1} parent=1 // pred_check
      _
    $region3: #{lstm_model_forward.1} parent=1 // pred_check_branch
      %18 = sbr.rel (0) target = $region5
    $region4: #{lstm_model_forward.1} parent=1 // pred_region
      _
    $region5: #{lstm_model_forward.1} parent=1 // pred_fallthru
      _
    // Predicated region
    $region6: #{lstm_model_forward.1} parent=1 // pred_check
      _
    $region7: #{lstm_model_forward.1} parent=1 // pred_check_branch
      %20 = sbr.rel (0) target = $region9
    $region8: #{lstm_model_forward.1} parent=1 // pred_region
      _
    $region9: #{lstm_model_forward.1} parent=1 // pred_fallthru
      _
    // Predicated region
    $region10: #{lstm_model_forward.1} parent=1 // pred_check
      _
    $region11: #{lstm_model_forward.1} parent=1 // pred_check_branch
      %22 = sbr.rel (0) target = $region13
    $region12: #{lstm_model_forward.1} parent=1 // pred_region
      _
    $region13: #{lstm_model_forward.1} parent=1 // pred_fallthru
      _
    // Predicated region
    $region14: #{lstm_model_forward.1} parent=1 // pred_check
      _
    $region15: #{lstm_model_forward.1} parent=1 // pred_check_branch
      %24 = sbr.rel (0) target = $region17
    $region16: #{lstm_model_forward.1} parent=1 // pred_region
      _
    $region17: #{lstm_model_forward.1} parent=1 // pred_fallthru
      _
    // Predicated region
    $region18: #{lstm_model_forward.1} parent=1 // pred_check
      _
    $region19: #{lstm_model_forward.1} parent=1 // pred_check_branch
      %26 = sbr.rel (0) target = $region21
    $region20: #{lstm_model_forward.1} parent=1 // pred_region
      _
    $region21: #{lstm_model_forward.1} parent=1 // pred_fallthru
      _
    // Predicated region
    $region22: #{lstm_model_forward.1} parent=1 // pred_check
      _
    $region23: #{lstm_model_forward.1} parent=1 // pred_check_branch
      %28 = sbr.rel (0) target = $region25
    $region24: #{lstm_model_forward.1} parent=1 // pred_region
      _
    $region25: #{lstm_model_forward.1} parent=1 // pred_fallthru
      _
    // Predicated region
    $region26: #{lstm_model_forward.1} parent=1 // pred_check
      _
    $region27: #{lstm_model_forward.1} parent=1 // pred_check_branch
      %30 = sbr.rel (0) target = $region29
    $region28: #{lstm_model_forward.1} parent=1 // pred_region
      _
    $region29: #{lstm_model_forward.1} parent=1 // pred_fallthru
      _
    // Predicated region
    $region30: #{lstm_model_forward.1} parent=1 // pred_check
      _
    $region31: #{lstm_model_forward.1} parent=1 // pred_check_branch
      %32 = sbr.rel (0) target = $region33
    $region32: #{lstm_model_forward.1} parent=1 // pred_region
      _
    $region33: #{lstm_model_forward.1} parent=1 // pred_fallthru
      _
    // Predicated region
    $region34: #{lstm_model_forward.1} parent=1 // pred_check
      _
    $region35: #{lstm_model_forward.1} parent=1 // pred_check_branch
      %34 = sbr.rel (0) target = $region37
    $region36: #{lstm_model_forward.1} parent=1 // pred_region
      _
    $region37: #{lstm_model_forward.1} parent=1 // pred_fallthru
      _
    // Predicated region
    $region38: #{lstm_model_forward.1} parent=1 // pred_check
      _
    $region39: #{lstm_model_forward.1} parent=1 // pred_check_branch
      %36 = sbr.rel (0) target = $region41
    $region40: #{lstm_model_forward.1} parent=1 // pred_region
      _
    $region41: #{lstm_model_forward.1} parent=1 // pred_fallthru
      _
    // Predicated region
    $region42: #{lstm_model_forward.1} parent=1 // pred_check
      _
    $region43: #{lstm_model_forward.1} parent=1 // pred_check_branch
      %38 = sbr.rel (0) target = $region45
    $region44: #{lstm_model_forward.1} parent=1 // pred_region
      _
    $region45: #{lstm_model_forward.1} parent=1 // pred_fallthru
      _
    %v39 = vld [vmem:[%s0] sm:$0xff]
    %v40 = vld [vmem:[%s0 + $0x8] sm:$0xff]
    %v41 = vld [vmem:[%s0 + $0x10] sm:$0xff]
    %v42 = vld [vmem:[%s0 + $0x18] sm:$0xff]
    %v43 = vld [vmem:[%s0 + $0x20] sm:$0xff]
    %v44 = vld [vmem:[%s0 + $0x28] sm:$0xff]
    %v45 = vld [vmem:[%s0 + $0x30] sm:$0xff]
    %v46 = vld [vmem:[%s0 + $0x38] sm:$0xff]
    %v47 = vlaneseq
    %v48 = vand.u32 %v47, 127
    %vm49 = vcmp.ge.s32.totalorder %v48, 64
    %vm50 = vcmp.lt.s32.totalorder %v48, 96
    %vm51 = vmand %vm49, %vm50
    %v52 = vsel %vm51, 1.0, 0.5
    %v53 = vsel %vm51, 0.0, 0.5
    %v54 = vld [vmem:[%s1] sm:$0xff]
    %v55 = vld [vmem:[%s1 + $0x8] sm:$0xff]
    %v56 = vld [vmem:[%s3] sm:$0x1]
    %v58 = vlaneseq
    %v59 = vshrl.u32 %v58, 7
    %v60 = vsub.s32 0, %v59
    %v61 = vrot.slane %v56, %v60
    %vm63 = vcmask 130048
    %v65 = vsel %vm63, %v39, 0
    %v68 = vsel %vm63, %v40, 0
    %v71 = vsel %vm63, %v41, 0
    %v74 = vsel %vm63, %v42, 0
    %v77 = vsel %vm63, %v43, 0
    %v80 = vsel %vm63, %v44, 0
    %v83 = vsel %vm63, %v45, 0
    %v86 = vsel %vm63, %v46, 0
    %88 = vmatprep.subr.mxu0 0.0
    %89 = vmatpush1.msra.mxu0 0.0
    %90 = vmatprep.subr.mxu0 0.0
    %91 = vmatpush1.msra.mxu0 0.0
    %92 = vmatprep.subr.mxu0 0.0
    %93 = vmatpush1.msra.mxu0 0.0
    %94 = vmatprep.subr.mxu0 0.0
    %95 = vmatpush1.msra.mxu0 0.0
    %96 = vmatprep.subr.mxu0 0.0
    %97 = vmatpush1.msra.mxu0 0.0
    %98 = vmatprep.subr.mxu0 0.0
    %99 = vmatpush1.msra.mxu0 0.0
    %100 = vmatprep.subr.mxu0 0.0
    %101 = vmatpush1.msra.mxu0 0.0
    %102 = vmatprep.subr.mxu0 0.0
    %103 = vmatpush1.msra.mxu0 0.0
    %104 = vmatprep.subr.mxu0 0.0
    %105 = vmatpush1.msra.mxu0 0.0
    %106 = vmatprep.subr.mxu0 0.0
    %107 = vmatpush1.msra.mxu0 0.0
    %108 = vmatprep.subr.mxu0 0.0
    %109 = vmatpush1.msra.mxu0 0.0
    %110 = vmatprep.subr.mxu0 0.0
    %111 = vmatpush1.msra.mxu0 0.0
    %112 = vmatprep.subr.mxu0 0.0
    %113 = vmatpush1.msra.mxu0 0.0
    %114 = vmatprep.subr.mxu0 0.0
    %115 = vmatpush1.msra.mxu0 0.0
    %116 = vmatprep.subr.mxu0 0.0
    %117 = vmatpush1.msra.mxu0 %v55
    %118 = vmatprep.subr.mxu0 0.0
    %119 = vmatpush1.msra.mxu0 %v54
    %120 = vmatprep.subr.mxu0 0.0
    %121 = vmatpush2.msra.mxu0 0.0
    %122 = vmatprep.subr.mxu0 0.0
    %123 = vmatpush2.msra.mxu0 0.0
    %124 = vmatprep.subr.mxu0 0.0
    %125 = vmatpush2.msra.mxu0 0.0
    %126 = vmatprep.subr.mxu0 0.0
    %127 = vmatpush2.msra.mxu0 0.0
    %128 = vmatprep.subr.mxu0 0.0
    %129 = vmatpush2.msra.mxu0 0.0
    %130 = vmatprep.subr.mxu0 0.0
    %131 = vmatpush2.msra.mxu0 0.0
    %132 = vmatprep.subr.mxu0 0.0
    %133 = vmatpush2.msra.mxu0 0.0
    %134 = vmatprep.subr.mxu0 0.0
    %135 = vmatpush2.msra.mxu0 0.0
    %136 = vmatprep.subr.mxu0 0.0
    %137 = vmatpush2.msra.mxu0 0.0
    %138 = vmatprep.subr.mxu0 0.0
    %139 = vmatpush2.msra.mxu0 0.0
    %140 = vmatprep.subr.mxu0 0.0
    %141 = vmatpush2.msra.mxu0 0.0
    %142 = vmatprep.subr.mxu0 0.0
    %143 = vmatpush2.msra.mxu0 0.0
    %144 = vmatprep.subr.mxu0 0.0
    %145 = vmatpush2.msra.mxu0 0.0
    %146 = vmatprep.subr.mxu0 0.0
    %147 = vmatpush2.msra.mxu0 0.0
    %148 = vmatprep.subr.mxu0 0.0
    %149 = vmatpush2.msra.mxu0 0.0
    %150 = vmatprep.subr.mxu0 0.0
    %151 = vmatpush2.msra.mxu0 0.0
    %152 = vmatprep.mubr.f32.mxu0 0.0
    %153 = vmatmul.mubr.f32.gmra.mxu0 %v65
    %v154 = vpop.f32.mrf.mxu0
    %v155 = vadd.f32 %v61, %v154
    %v156 = vpop.f32.mrf.mxu0
    %157 = vmatprep.mubr.f32.mxu0 0.0
    %158 = vmatmul.mubr.f32.gmra.mxu0 %v68
    %v159 = vpop.f32.mrf.mxu0
    %v160 = vadd.f32 %v61, %v159
    %v161 = vpop.f32.mrf.mxu0
    %162 = vmatprep.mubr.f32.mxu0 0.0
    %163 = vmatmul.mubr.f32.gmra.mxu0 %v71
    %v164 = vpop.f32.mrf.mxu0
    %v165 = vadd.f32 %v61, %v164
    %v166 = vpop.f32.mrf.mxu0
    %167 = vmatprep.mubr.f32.mxu0 0.0
    %168 = vmatmul.mubr.f32.gmra.mxu0 %v74
    %v169 = vpop.f32.mrf.mxu0
    %v170 = vadd.f32 %v61, %v169
    %v171 = vpop.f32.mrf.mxu0
    %172 = vmatprep.mubr.f32.mxu0 0.0
    %173 = vmatmul.mubr.f32.gmra.mxu0 %v77
    %v174 = vpop.f32.mrf.mxu0
    %v175 = vadd.f32 %v61, %v174
    %v176 = vpop.f32.mrf.mxu0
    %177 = vmatprep.mubr.f32.mxu0 0.0
    %178 = vmatmul.mubr.f32.gmra.mxu0 %v80
    %v179 = vpop.f32.mrf.mxu0
    %v180 = vadd.f32 %v61, %v179
    %v181 = vpop.f32.mrf.mxu0
    %182 = vmatprep.mubr.f32.mxu0 0.0
    %183 = vmatmul.mubr.f32.gmra.mxu0 %v83
    %v184 = vpop.f32.mrf.mxu0
    %v185 = vadd.f32 %v61, %v184
    %v186 = vpop.f32.mrf.mxu0
    %187 = vmatprep.mubr.f32.mxu0 0.0
    %188 = vmatmul.mubr.f32.gmra.mxu0 %v86
    %v189 = vpop.f32.mrf.mxu0
    %v190 = vadd.f32 %v61, %v189
    %v191 = vpop.f32.mrf.mxu0
    %192 = vdwg.mxu0
    %v193 = vld [vmem:[%s2] sm:$0xff]
    %v194 = vld [vmem:[%s2 + $0x8] sm:$0xff]
    %v195 = vld [vmem:[%s2 + $0x10] sm:$0xff]
    %v196 = vld [vmem:[%s2 + $0x18] sm:$0xff]
    %vm197 = vcmask 261120
    %v199 = vsel %vm197, 0.0, 0
    %201 = vmatprep.subr.mxu0 0.0
    %202 = vmatpush1.msra.mxu0 0.0
    %203 = vmatprep.subr.mxu0 0.0
    %204 = vmatpush1.msra.mxu0 0.0
    %205 = vmatprep.subr.mxu0 0.0
    %206 = vmatpush1.msra.mxu0 0.0
    %207 = vmatprep.subr.mxu0 0.0
    %208 = vmatpush1.msra.mxu0 0.0
    %209 = vmatprep.subr.mxu0 0.0
    %210 = vmatpush1.msra.mxu0 0.0
    %211 = vmatprep.subr.mxu0 0.0
    %212 = vmatpush1.msra.mxu0 0.0
    %213 = vmatprep.subr.mxu0 0.0
    %214 = vmatpush1.msra.mxu0 0.0
    %215 = vmatprep.subr.mxu0 0.0
    %216 = vmatpush1.msra.mxu0 0.0
    %217 = vmatprep.subr.mxu0 0.0
    %218 = vmatpush1.msra.mxu0 0.0
    %219 = vmatprep.subr.mxu0 0.0
    %220 = vmatpush1.msra.mxu0 0.0
    %221 = vmatprep.subr.mxu0 0.0
    %222 = vmatpush1.msra.mxu0 0.0
    %223 = vmatprep.subr.mxu0 0.0
    %224 = vmatpush1.msra.mxu0 0.0
    %225 = vmatprep.subr.mxu0 0.0
    %226 = vmatpush1.msra.mxu0 %v196
    %227 = vmatprep.subr.mxu0 0.0
    %228 = vmatpush1.msra.mxu0 %v195
    %229 = vmatprep.subr.mxu0 0.0
    %230 = vmatpush1.msra.mxu0 %v194
    %231 = vmatprep.subr.mxu0 0.0
    %232 = vmatpush1.msra.mxu0 %v193
    %233 = vmatprep.subr.mxu0 0.0
    %234 = vmatpush2.msra.mxu0 0.0
    %235 = vmatprep.subr.mxu0 0.0
    %236 = vmatpush2.msra.mxu0 0.0
    %237 = vmatprep.subr.mxu0 0.0
    %238 = vmatpush2.msra.mxu0 0.0
    %239 = vmatprep.subr.mxu0 0.0
    %240 = vmatpush2.msra.mxu0 0.0
    %241 = vmatprep.subr.mxu0 0.0
    %242 = vmatpush2.msra.mxu0 0.0
    %243 = vmatprep.subr.mxu0 0.0
    %244 = vmatpush2.msra.mxu0 0.0
    %245 = vmatprep.subr.mxu0 0.0
    %246 = vmatpush2.msra.mxu0 0.0
    %247 = vmatprep.subr.mxu0 0.0
    %248 = vmatpush2.msra.mxu0 0.0
    %249 = vmatprep.subr.mxu0 0.0
    %250 = vmatpush2.msra.mxu0 0.0
    %251 = vmatprep.subr.mxu0 0.0
    %252 = vmatpush2.msra.mxu0 0.0
    %253 = vmatprep.subr.mxu0 0.0
    %254 = vmatpush2.msra.mxu0 0.0
    %255 = vmatprep.subr.mxu0 0.0
    %256 = vmatpush2.msra.mxu0 0.0
    %257 = vmatprep.subr.mxu0 0.0
    %258 = vmatpush2.msra.mxu0 0.0
    %259 = vmatprep.subr.mxu0 0.0
    %260 = vmatpush2.msra.mxu0 0.0
    %261 = vmatprep.subr.mxu0 0.0
    %262 = vmatpush2.msra.mxu0 0.0
    %263 = vmatprep.subr.mxu0 0.0
    %264 = vmatpush2.msra.mxu0 0.0
    %265 = vmatprep.mubr.f32.mxu0 0.0
    %266 = vmatmul.mubr.f32.gmra.mxu0 %v199
    %v267 = vpop.f32.mrf.mxu0
    %v268 = vadd.f32 0.0, %v267
    %v269 = vpop.f32.mrf.mxu0
    %270 = vdwg.mxu0
    %v271 = vadd.f32 %v155, %v268
    %v272 = vtanh.pop %v271
    %v273 = vmul.f32 %v272, %v52
    %v274 = vadd.f32 %v273, %v53
    %275 = vrot.lane.b32.xlu0 %v274, 96
    %v276 = vpop.permute.xlu0 %275
    %277 = vrot.lane.b32.xlu0 %v274, 64
    %v278 = vpop.permute.xlu0 %277
    %279 = vrot.lane.b32.xlu0 %v274, 32
    %v280 = vpop.permute.xlu0 %279
    %v281 = vmul.f32 %v276, 0.0
    %v282 = vmul.f32 %v274, %v278
    %v283 = vadd.f32 %v281, %v282
    %v284 = vtanh.pop %v283
    %v285 = vmul.f32 %v280, %v284
    %v287 = vsel %vm197, %v285, 0
    %289 = vmatprep.subr.mxu0 0.0
    %290 = vmatpush1.msra.mxu0 0.0
    %291 = vmatprep.subr.mxu0 0.0
    %292 = vmatpush1.msra.mxu0 0.0
    %293 = vmatprep.subr.mxu0 0.0
    %294 = vmatpush1.msra.mxu0 0.0
    %295 = vmatprep.subr.mxu0 0.0
    %296 = vmatpush1.msra.mxu0 0.0
    %297 = vmatprep.subr.mxu0 0.0
    %298 = vmatpush1.msra.mxu0 0.0
    %299 = vmatprep.subr.mxu0 0.0
    %300 = vmatpush1.msra.mxu0 0.0
    %301 = vmatprep.subr.mxu0 0.0
    %302 = vmatpush1.msra.mxu0 0.0
    %303 = vmatprep.subr.mxu0 0.0
    %304 = vmatpush1.msra.mxu0 0.0
    %305 = vmatprep.subr.mxu0 0.0
    %306 = vmatpush1.msra.mxu0 0.0
    %307 = vmatprep.subr.mxu0 0.0
    %308 = vmatpush1.msra.mxu0 0.0
    %309 = vmatprep.subr.mxu0 0.0
    %310 = vmatpush1.msra.mxu0 0.0
    %311 = vmatprep.subr.mxu0 0.0
    %312 = vmatpush1.msra.mxu0 0.0
    %313 = vmatprep.subr.mxu0 0.0
    %314 = vmatpush1.msra.mxu0 %v196
    %315 = vmatprep.subr.mxu0 0.0
    %316 = vmatpush1.msra.mxu0 %v195
    %317 = vmatprep.subr.mxu0 0.0
    %318 = vmatpush1.msra.mxu0 %v194
    %319 = vmatprep.subr.mxu0 0.0
    %320 = vmatpush1.msra.mxu0 %v193
    %321 = vmatprep.subr.mxu0 0.0
    %322 = vmatpush2.msra.mxu0 0.0
    %323 = vmatprep.subr.mxu0 0.0
    %324 = vmatpush2.msra.mxu0 0.0
    %325 = vmatprep.subr.mxu0 0.0
    %326 = vmatpush2.msra.mxu0 0.0
    %327 = vmatprep.subr.mxu0 0.0
    %328 = vmatpush2.msra.mxu0 0.0
    %329 = vmatprep.subr.mxu0 0.0
    %330 = vmatpush2.msra.mxu0 0.0
    %331 = vmatprep.subr.mxu0 0.0
    %332 = vmatpush2.msra.mxu0 0.0
    %333 = vmatprep.subr.mxu0 0.0
    %334 = vmatpush2.msra.mxu0 0.0
    %335 = vmatprep.subr.mxu0 0.0
    %336 = vmatpush2.msra.mxu0 0.0
    %337 = vmatprep.subr.mxu0 0.0
    %338 = vmatpush2.msra.mxu0 0.0
    %339 = vmatprep.subr.mxu0 0.0
    %340 = vmatpush2.msra.mxu0 0.0
    %341 = vmatprep.subr.mxu0 0.0
    %342 = vmatpush2.msra.mxu0 0.0
    %343 = vmatprep.subr.mxu0 0.0
    %344 = vmatpush2.msra.mxu0 0.0
    %345 = vmatprep.subr.mxu0 0.0
    %346 = vmatpush2.msra.mxu0 0.0
    %347 = vmatprep.subr.mxu0 0.0
    %348 = vmatpush2.msra.mxu0 0.0
    %349 = vmatprep.subr.mxu0 0.0
    %350 = vmatpush2.msra.mxu0 0.0
    %351 = vmatprep.subr.mxu0 0.0
    %352 = vmatpush2.msra.mxu0 0.0
    %353 = vmatprep.mubr.f32.mxu0 0.0
    %354 = vmatmul.mubr.f32.gmra.mxu0 %v287
    %v355 = vpop.f32.mrf.mxu0
    %v356 = vadd.f32 0.0, %v355
    %v357 = vpop.f32.mrf.mxu0
    %358 = vdwg.mxu0
    %v359 = vadd.f32 %v160, %v356
    %v360 = vtanh.pop %v359
    %v361 = vmul.f32 %v360, %v52
    %v362 = vadd.f32 %v361, %v53
    %363 = vrot.lane.b32.xlu0 %v362, 96
    %v364 = vpop.permute.xlu0 %363
    %365 = vrot.lane.b32.xlu0 %v362, 64
    %v366 = vpop.permute.xlu0 %365
    %367 = vrot.lane.b32.xlu0 %v362, 32
    %v368 = vpop.permute.xlu0 %367
    %v369 = vmul.f32 %v364, %v283
    %v370 = vmul.f32 %v362, %v366
    %v371 = vadd.f32 %v369, %v370
    %v372 = vtanh.pop %v371
    %v373 = vmul.f32 %v368, %v372
    %v375 = vsel %vm197, %v373, 0
    %377 = vmatprep.subr.mxu0 0.0
    %378 = vmatpush1.msra.mxu0 0.0
    %379 = vmatprep.subr.mxu0 0.0
    %380 = vmatpush1.msra.mxu0 0.0
    %381 = vmatprep.subr.mxu0 0.0
    %382 = vmatpush1.msra.mxu0 0.0
    %383 = vmatprep.subr.mxu0 0.0
    %384 = vmatpush1.msra.mxu0 0.0
    %385 = vmatprep.subr.mxu0 0.0
    %386 = vmatpush1.msra.mxu0 0.0
    %387 = vmatprep.subr.mxu0 0.0
    %388 = vmatpush1.msra.mxu0 0.0
    %389 = vmatprep.subr.mxu0 0.0
    %390 = vmatpush1.msra.mxu0 0.0
    %391 = vmatprep.subr.mxu0 0.0
    %392 = vmatpush1.msra.mxu0 0.0
    %393 = vmatprep.subr.mxu0 0.0
    %394 = vmatpush1.msra.mxu0 0.0
    %395 = vmatprep.subr.mxu0 0.0
    %396 = vmatpush1.msra.mxu0 0.0
    %397 = vmatprep.subr.mxu0 0.0
    %398 = vmatpush1.msra.mxu0 0.0
    %399 = vmatprep.subr.mxu0 0.0
    %400 = vmatpush1.msra.mxu0 0.0
    %401 = vmatprep.subr.mxu0 0.0
    %402 = vmatpush1.msra.mxu0 %v196
    %403 = vmatprep.subr.mxu0 0.0
    %404 = vmatpush1.msra.mxu0 %v195
    %405 = vmatprep.subr.mxu0 0.0
    %406 = vmatpush1.msra.mxu0 %v194
    %407 = vmatprep.subr.mxu0 0.0
    %408 = vmatpush1.msra.mxu0 %v193
    %409 = vmatprep.subr.mxu0 0.0
    %410 = vmatpush2.msra.mxu0 0.0
    %411 = vmatprep.subr.mxu0 0.0
    %412 = vmatpush2.msra.mxu0 0.0
    %413 = vmatprep.subr.mxu0 0.0
    %414 = vmatpush2.msra.mxu0 0.0
    %415 = vmatprep.subr.mxu0 0.0
    %416 = vmatpush2.msra.mxu0 0.0
    %417 = vmatprep.subr.mxu0 0.0
    %418 = vmatpush2.msra.mxu0 0.0
    %419 = vmatprep.subr.mxu0 0.0
    %420 = vmatpush2.msra.mxu0 0.0
    %421 = vmatprep.subr.mxu0 0.0
    %422 = vmatpush2.msra.mxu0 0.0
    %423 = vmatprep.subr.mxu0 0.0
    %424 = vmatpush2.msra.mxu0 0.0
    %425 = vmatprep.subr.mxu0 0.0
    %426 = vmatpush2.msra.mxu0 0.0
    %427 = vmatprep.subr.mxu0 0.0
    %428 = vmatpush2.msra.mxu0 0.0
    %429 = vmatprep.subr.mxu0 0.0
    %430 = vmatpush2.msra.mxu0 0.0
    %431 = vmatprep.subr.mxu0 0.0
    %432 = vmatpush2.msra.mxu0 0.0
    %433 = vmatprep.subr.mxu0 0.0
    %434 = vmatpush2.msra.mxu0 0.0
    %435 = vmatprep.subr.mxu0 0.0
    %436 = vmatpush2.msra.mxu0 0.0
    %437 = vmatprep.subr.mxu0 0.0
    %438 = vmatpush2.msra.mxu0 0.0
    %439 = vmatprep.subr.mxu0 0.0
    %440 = vmatpush2.msra.mxu0 0.0
    %441 = vmatprep.mubr.f32.mxu0 0.0
    %442 = vmatmul.mubr.f32.gmra.mxu0 %v375
    %v443 = vpop.f32.mrf.mxu0
    %v444 = vadd.f32 0.0, %v443
    %v445 = vpop.f32.mrf.mxu0
    %446 = vdwg.mxu0
    %v447 = vadd.f32 %v165, %v444
    %v448 = vtanh.pop %v447
    %v449 = vmul.f32 %v448, %v52
    %v450 = vadd.f32 %v449, %v53
    %451 = vrot.lane.b32.xlu0 %v450, 96
    %v452 = vpop.permute.xlu0 %451
    %453 = vrot.lane.b32.xlu0 %v450, 64
    %v454 = vpop.permute.xlu0 %453
    %455 = vrot.lane.b32.xlu0 %v450, 32
    %v456 = vpop.permute.xlu0 %455
    %v457 = vmul.f32 %v452, %v371
    %v458 = vmul.f32 %v450, %v454
    %v459 = vadd.f32 %v457, %v458
    %v460 = vtanh.pop %v459
    %v461 = vmul.f32 %v456, %v460
    %v463 = vsel %vm197, %v461, 0
    %465 = vmatprep.subr.mxu0 0.0
    %466 = vmatpush1.msra.mxu0 0.0
    %467 = vmatprep.subr.mxu0 0.0
    %468 = vmatpush1.msra.mxu0 0.0
    %469 = vmatprep.subr.mxu0 0.0
    %470 = vmatpush1.msra.mxu0 0.0
    %471 = vmatprep.subr.mxu0 0.0
    %472 = vmatpush1.msra.mxu0 0.0
    %473 = vmatprep.subr.mxu0 0.0
    %474 = vmatpush1.msra.mxu0 0.0
    %475 = vmatprep.subr.mxu0 0.0
    %476 = vmatpush1.msra.mxu0 0.0
    %477 = vmatprep.subr.mxu0 0.0
    %478 = vmatpush1.msra.mxu0 0.0
    %479 = vmatprep.subr.mxu0 0.0
    %480 = vmatpush1.msra.mxu0 0.0
    %481 = vmatprep.subr.mxu0 0.0
    %482 = vmatpush1.msra.mxu0 0.0
    %483 = vmatprep.subr.mxu0 0.0
    %484 = vmatpush1.msra.mxu0 0.0
    %485 = vmatprep.subr.mxu0 0.0
    %486 = vmatpush1.msra.mxu0 0.0
    %487 = vmatprep.subr.mxu0 0.0
    %488 = vmatpush1.msra.mxu0 0.0
    %489 = vmatprep.subr.mxu0 0.0
    %490 = vmatpush1.msra.mxu0 %v196
    %491 = vmatprep.subr.mxu0 0.0
    %492 = vmatpush1.msra.mxu0 %v195
    %493 = vmatprep.subr.mxu0 0.0
    %494 = vmatpush1.msra.mxu0 %v194
    %495 = vmatprep.subr.mxu0 0.0
    %496 = vmatpush1.msra.mxu0 %v193
    %497 = vmatprep.subr.mxu0 0.0
    %498 = vmatpush2.msra.mxu0 0.0
    %499 = vmatprep.subr.mxu0 0.0
    %500 = vmatpush2.msra.mxu0 0.0
    %501 = vmatprep.subr.mxu0 0.0
    %502 = vmatpush2.msra.mxu0 0.0
    %503 = vmatprep.subr.mxu0 0.0
    %504 = vmatpush2.msra.mxu0 0.0
    %505 = vmatprep.subr.mxu0 0.0
    %506 = vmatpush2.msra.mxu0 0.0
    %507 = vmatprep.subr.mxu0 0.0
    %508 = vmatpush2.msra.mxu0 0.0
    %509 = vmatprep.subr.mxu0 0.0
    %510 = vmatpush2.msra.mxu0 0.0
    %511 = vmatprep.subr.mxu0 0.0
    %512 = vmatpush2.msra.mxu0 0.0
    %513 = vmatprep.subr.mxu0 0.0
    %514 = vmatpush2.msra.mxu0 0.0
    %515 = vmatprep.subr.mxu0 0.0
    %516 = vmatpush2.msra.mxu0 0.0
    %517 = vmatprep.subr.mxu0 0.0
    %518 = vmatpush2.msra.mxu0 0.0
    %519 = vmatprep.subr.mxu0 0.0
    %520 = vmatpush2.msra.mxu0 0.0
    %521 = vmatprep.subr.mxu0 0.0
    %522 = vmatpush2.msra.mxu0 0.0
    %523 = vmatprep.subr.mxu0 0.0
    %524 = vmatpush2.msra.mxu0 0.0
    %525 = vmatprep.subr.mxu0 0.0
    %526 = vmatpush2.msra.mxu0 0.0
    %527 = vmatprep.subr.mxu0 0.0
    %528 = vmatpush2.msra.mxu0 0.0
    %529 = vmatprep.mubr.f32.mxu0 0.0
    %530 = vmatmul.mubr.f32.gmra.mxu0 %v463
    %v531 = vpop.f32.mrf.mxu0
    %v532 = vadd.f32 0.0, %v531
    %v533 = vpop.f32.mrf.mxu0
    %534 = vdwg.mxu0
    %v535 = vadd.f32 %v170, %v532
    %v536 = vtanh.pop %v535
    %v537 = vmul.f32 %v536, %v52
    %v538 = vadd.f32 %v537, %v53
    %539 = vrot.lane.b32.xlu0 %v538, 96
    %v540 = vpop.permute.xlu0 %539
    %541 = vrot.lane.b32.xlu0 %v538, 64
    %v542 = vpop.permute.xlu0 %541
    %543 = vrot.lane.b32.xlu0 %v538, 32
    %v544 = vpop.permute.xlu0 %543
    %v545 = vmul.f32 %v540, %v459
    %v546 = vmul.f32 %v538, %v542
    %v547 = vadd.f32 %v545, %v546
    %v548 = vtanh.pop %v547
    %v549 = vmul.f32 %v544, %v548
    %v551 = vsel %vm197, %v549, 0
    %553 = vmatprep.subr.mxu0 0.0
    %554 = vmatpush1.msra.mxu0 0.0
    %555 = vmatprep.subr.mxu0 0.0
    %556 = vmatpush1.msra.mxu0 0.0
    %557 = vmatprep.subr.mxu0 0.0
    %558 = vmatpush1.msra.mxu0 0.0
    %559 = vmatprep.subr.mxu0 0.0
    %560 = vmatpush1.msra.mxu0 0.0
    %561 = vmatprep.subr.mxu0 0.0
    %562 = vmatpush1.msra.mxu0 0.0
    %563 = vmatprep.subr.mxu0 0.0
    %564 = vmatpush1.msra.mxu0 0.0
    %565 = vmatprep.subr.mxu0 0.0
    %566 = vmatpush1.msra.mxu0 0.0
    %567 = vmatprep.subr.mxu0 0.0
    %568 = vmatpush1.msra.mxu0 0.0
    %569 = vmatprep.subr.mxu0 0.0
    %570 = vmatpush1.msra.mxu0 0.0
    %571 = vmatprep.subr.mxu0 0.0
    %572 = vmatpush1.msra.mxu0 0.0
    %573 = vmatprep.subr.mxu0 0.0
    %574 = vmatpush1.msra.mxu0 0.0
    %575 = vmatprep.subr.mxu0 0.0
    %576 = vmatpush1.msra.mxu0 0.0
    %577 = vmatprep.subr.mxu0 0.0
    %578 = vmatpush1.msra.mxu0 %v196
    %579 = vmatprep.subr.mxu0 0.0
    %580 = vmatpush1.msra.mxu0 %v195
    %581 = vmatprep.subr.mxu0 0.0
    %582 = vmatpush1.msra.mxu0 %v194
    %583 = vmatprep.subr.mxu0 0.0
    %584 = vmatpush1.msra.mxu0 %v193
    %585 = vmatprep.subr.mxu0 0.0
    %586 = vmatpush2.msra.mxu0 0.0
    %587 = vmatprep.subr.mxu0 0.0
    %588 = vmatpush2.msra.mxu0 0.0
    %589 = vmatprep.subr.mxu0 0.0
    %590 = vmatpush2.msra.mxu0 0.0
    %591 = vmatprep.subr.mxu0 0.0
    %592 = vmatpush2.msra.mxu0 0.0
    %593 = vmatprep.subr.mxu0 0.0
    %594 = vmatpush2.msra.mxu0 0.0
    %595 = vmatprep.subr.mxu0 0.0
    %596 = vmatpush2.msra.mxu0 0.0
    %597 = vmatprep.subr.mxu0 0.0
    %598 = vmatpush2.msra.mxu0 0.0
    %599 = vmatprep.subr.mxu0 0.0
    %600 = vmatpush2.msra.mxu0 0.0
    %601 = vmatprep.subr.mxu0 0.0
    %602 = vmatpush2.msra.mxu0 0.0
    %603 = vmatprep.subr.mxu0 0.0
    %604 = vmatpush2.msra.mxu0 0.0
    %605 = vmatprep.subr.mxu0 0.0
    %606 = vmatpush2.msra.mxu0 0.0
    %607 = vmatprep.subr.mxu0 0.0
    %608 = vmatpush2.msra.mxu0 0.0
    %609 = vmatprep.subr.mxu0 0.0
    %610 = vmatpush2.msra.mxu0 0.0
    %611 = vmatprep.subr.mxu0 0.0
    %612 = vmatpush2.msra.mxu0 0.0
    %613 = vmatprep.subr.mxu0 0.0
    %614 = vmatpush2.msra.mxu0 0.0
    %615 = vmatprep.subr.mxu0 0.0
    %616 = vmatpush2.msra.mxu0 0.0
    %617 = vmatprep.mubr.f32.mxu0 0.0
    %618 = vmatmul.mubr.f32.gmra.mxu0 %v551
    %v619 = vpop.f32.mrf.mxu0
    %v620 = vadd.f32 0.0, %v619
    %v621 = vpop.f32.mrf.mxu0
    %622 = vdwg.mxu0
    %v623 = vadd.f32 %v175, %v620
    %v624 = vtanh.pop %v623
    %v625 = vmul.f32 %v624, %v52
    %v626 = vadd.f32 %v625, %v53
    %627 = vrot.lane.b32.xlu0 %v626, 96
    %v628 = vpop.permute.xlu0 %627
    %629 = vrot.lane.b32.xlu0 %v626, 64
    %v630 = vpop.permute.xlu0 %629
    %631 = vrot.lane.b32.xlu0 %v626, 32
    %v632 = vpop.permute.xlu0 %631
    %v633 = vmul.f32 %v628, %v547
    %v634 = vmul.f32 %v626, %v630
    %v635 = vadd.f32 %v633, %v634
    %v636 = vtanh.pop %v635
    %v637 = vmul.f32 %v632, %v636
    %v639 = vsel %vm197, %v637, 0
    %641 = vmatprep.subr.mxu0 0.0
    %642 = vmatpush1.msra.mxu0 0.0
    %643 = vmatprep.subr.mxu0 0.0
    %644 = vmatpush1.msra.mxu0 0.0
    %645 = vmatprep.subr.mxu0 0.0
    %646 = vmatpush1.msra.mxu0 0.0
    %647 = vmatprep.subr.mxu0 0.0
    %648 = vmatpush1.msra.mxu0 0.0
    %649 = vmatprep.subr.mxu0 0.0
    %650 = vmatpush1.msra.mxu0 0.0
    %651 = vmatprep.subr.mxu0 0.0
    %652 = vmatpush1.msra.mxu0 0.0
    %653 = vmatprep.subr.mxu0 0.0
    %654 = vmatpush1.msra.mxu0 0.0
    %655 = vmatprep.subr.mxu0 0.0
    %656 = vmatpush1.msra.mxu0 0.0
    %657 = vmatprep.subr.mxu0 0.0
    %658 = vmatpush1.msra.mxu0 0.0
    %659 = vmatprep.subr.mxu0 0.0
    %660 = vmatpush1.msra.mxu0 0.0
    %661 = vmatprep.subr.mxu0 0.0
    %662 = vmatpush1.msra.mxu0 0.0
    %663 = vmatprep.subr.mxu0 0.0
    %664 = vmatpush1.msra.mxu0 0.0
    %665 = vmatprep.subr.mxu0 0.0
    %666 = vmatpush1.msra.mxu0 %v196
    %667 = vmatprep.subr.mxu0 0.0
    %668 = vmatpush1.msra.mxu0 %v195
    %669 = vmatprep.subr.mxu0 0.0
    %670 = vmatpush1.msra.mxu0 %v194
    %671 = vmatprep.subr.mxu0 0.0
    %672 = vmatpush1.msra.mxu0 %v193
    %673 = vmatprep.subr.mxu0 0.0
    %674 = vmatpush2.msra.mxu0 0.0
    %675 = vmatprep.subr.mxu0 0.0
    %676 = vmatpush2.msra.mxu0 0.0
    %677 = vmatprep.subr.mxu0 0.0
    %678 = vmatpush2.msra.mxu0 0.0
    %679 = vmatprep.subr.mxu0 0.0
    %680 = vmatpush2.msra.mxu0 0.0
    %681 = vmatprep.subr.mxu0 0.0
    %682 = vmatpush2.msra.mxu0 0.0
    %683 = vmatprep.subr.mxu0 0.0
    %684 = vmatpush2.msra.mxu0 0.0
    %685 = vmatprep.subr.mxu0 0.0
    %686 = vmatpush2.msra.mxu0 0.0
    %687 = vmatprep.subr.mxu0 0.0
    %688 = vmatpush2.msra.mxu0 0.0
    %689 = vmatprep.subr.mxu0 0.0
    %690 = vmatpush2.msra.mxu0 0.0
    %691 = vmatprep.subr.mxu0 0.0
    %692 = vmatpush2.msra.mxu0 0.0
    %693 = vmatprep.subr.mxu0 0.0
    %694 = vmatpush2.msra.mxu0 0.0
    %695 = vmatprep.subr.mxu0 0.0
    %696 = vmatpush2.msra.mxu0 0.0
    %697 = vmatprep.subr.mxu0 0.0
    %698 = vmatpush2.msra.mxu0 0.0
    %699 = vmatprep.subr.mxu0 0.0
    %700 = vmatpush2.msra.mxu0 0.0
    %701 = vmatprep.subr.mxu0 0.0
    %702 = vmatpush2.msra.mxu0 0.0
    %703 = vmatprep.subr.mxu0 0.0
    %704 = vmatpush2.msra.mxu0 0.0
    %705 = vmatprep.mubr.f32.mxu0 0.0
    %706 = vmatmul.mubr.f32.gmra.mxu0 %v639
    %v707 = vpop.f32.mrf.mxu0
    %v708 = vadd.f32 0.0, %v707
    %v709 = vpop.f32.mrf.mxu0
    %710 = vdwg.mxu0
    %v711 = vadd.f32 %v180, %v708
    %v712 = vtanh.pop %v711
    %v713 = vmul.f32 %v712, %v52
    %v714 = vadd.f32 %v713, %v53
    %715 = vrot.lane.b32.xlu0 %v714, 96
    %v716 = vpop.permute.xlu0 %715
    %717 = vrot.lane.b32.xlu0 %v714, 64
    %v718 = vpop.permute.xlu0 %717
    %719 = vrot.lane.b32.xlu0 %v714, 32
    %v720 = vpop.permute.xlu0 %719
    %v721 = vmul.f32 %v716, %v635
    %v722 = vmul.f32 %v714, %v718
    %v723 = vadd.f32 %v721, %v722
    %v724 = vtanh.pop %v723
    %v725 = vmul.f32 %v720, %v724
    %v727 = vsel %vm197, %v725, 0
    %729 = vmatprep.subr.mxu0 0.0
    %730 = vmatpush1.msra.mxu0 0.0
    %731 = vmatprep.subr.mxu0 0.0
    %732 = vmatpush1.msra.mxu0 0.0
    %733 = vmatprep.subr.mxu0 0.0
    %734 = vmatpush1.msra.mxu0 0.0
    %735 = vmatprep.subr.mxu0 0.0
    %736 = vmatpush1.msra.mxu0 0.0
    %737 = vmatprep.subr.mxu0 0.0
    %738 = vmatpush1.msra.mxu0 0.0
    %739 = vmatprep.subr.mxu0 0.0
    %740 = vmatpush1.msra.mxu0 0.0
    %741 = vmatprep.subr.mxu0 0.0
    %742 = vmatpush1.msra.mxu0 0.0
    %743 = vmatprep.subr.mxu0 0.0
    %744 = vmatpush1.msra.mxu0 0.0
    %745 = vmatprep.subr.mxu0 0.0
    %746 = vmatpush1.msra.mxu0 0.0
    %747 = vmatprep.subr.mxu0 0.0
    %748 = vmatpush1.msra.mxu0 0.0
    %749 = vmatprep.subr.mxu0 0.0
    %750 = vmatpush1.msra.mxu0 0.0
    %751 = vmatprep.subr.mxu0 0.0
    %752 = vmatpush1.msra.mxu0 0.0
    %753 = vmatprep.subr.mxu0 0.0
    %754 = vmatpush1.msra.mxu0 %v196
    %755 = vmatprep.subr.mxu0 0.0
    %756 = vmatpush1.msra.mxu0 %v195
    %757 = vmatprep.subr.mxu0 0.0
    %758 = vmatpush1.msra.mxu0 %v194
    %759 = vmatprep.subr.mxu0 0.0
    %760 = vmatpush1.msra.mxu0 %v193
    %761 = vmatprep.subr.mxu0 0.0
    %762 = vmatpush2.msra.mxu0 0.0
    %763 = vmatprep.subr.mxu0 0.0
    %764 = vmatpush2.msra.mxu0 0.0
    %765 = vmatprep.subr.mxu0 0.0
    %766 = vmatpush2.msra.mxu0 0.0
    %767 = vmatprep.subr.mxu0 0.0
    %768 = vmatpush2.msra.mxu0 0.0
    %769 = vmatprep.subr.mxu0 0.0
    %770 = vmatpush2.msra.mxu0 0.0
    %771 = vmatprep.subr.mxu0 0.0
    %772 = vmatpush2.msra.mxu0 0.0
    %773 = vmatprep.subr.mxu0 0.0
    %774 = vmatpush2.msra.mxu0 0.0
    %775 = vmatprep.subr.mxu0 0.0
    %776 = vmatpush2.msra.mxu0 0.0
    %777 = vmatprep.subr.mxu0 0.0
    %778 = vmatpush2.msra.mxu0 0.0
    %779 = vmatprep.subr.mxu0 0.0
    %780 = vmatpush2.msra.mxu0 0.0
    %781 = vmatprep.subr.mxu0 0.0
    %782 = vmatpush2.msra.mxu0 0.0
    %783 = vmatprep.subr.mxu0 0.0
    %784 = vmatpush2.msra.mxu0 0.0
    %785 = vmatprep.subr.mxu0 0.0
    %786 = vmatpush2.msra.mxu0 0.0
    %787 = vmatprep.subr.mxu0 0.0
    %788 = vmatpush2.msra.mxu0 0.0
    %789 = vmatprep.subr.mxu0 0.0
    %790 = vmatpush2.msra.mxu0 0.0
    %791 = vmatprep.subr.mxu0 0.0
    %792 = vmatpush2.msra.mxu0 0.0
    %793 = vmatprep.mubr.f32.mxu0 0.0
    %794 = vmatmul.mubr.f32.gmra.mxu0 %v727
    %v795 = vpop.f32.mrf.mxu0
    %v796 = vadd.f32 0.0, %v795
    %v797 = vpop.f32.mrf.mxu0
    %798 = vdwg.mxu0
    %v799 = vadd.f32 %v185, %v796
    %v800 = vtanh.pop %v799
    %v801 = vmul.f32 %v800, %v52
    %v802 = vadd.f32 %v801, %v53
    %803 = vrot.lane.b32.xlu0 %v802, 96
    %v804 = vpop.permute.xlu0 %803
    %805 = vrot.lane.b32.xlu0 %v802, 64
    %v806 = vpop.permute.xlu0 %805
    %807 = vrot.lane.b32.xlu0 %v802, 32
    %v808 = vpop.permute.xlu0 %807
    %v809 = vmul.f32 %v804, %v723
    %v810 = vmul.f32 %v802, %v806
    %v811 = vadd.f32 %v809, %v810
    %v812 = vtanh.pop %v811
    %v813 = vmul.f32 %v808, %v812
    %v815 = vsel %vm197, %v813, 0
    %817 = vmatprep.subr.mxu0 0.0
    %818 = vmatpush1.msra.mxu0 0.0
    %819 = vmatprep.subr.mxu0 0.0
    %820 = vmatpush1.msra.mxu0 0.0
    %821 = vmatprep.subr.mxu0 0.0
    %822 = vmatpush1.msra.mxu0 0.0
    %823 = vmatprep.subr.mxu0 0.0
    %824 = vmatpush1.msra.mxu0 0.0
    %825 = vmatprep.subr.mxu0 0.0
    %826 = vmatpush1.msra.mxu0 0.0
    %827 = vmatprep.subr.mxu0 0.0
    %828 = vmatpush1.msra.mxu0 0.0
    %829 = vmatprep.subr.mxu0 0.0
    %830 = vmatpush1.msra.mxu0 0.0
    %831 = vmatprep.subr.mxu0 0.0
    %832 = vmatpush1.msra.mxu0 0.0
    %833 = vmatprep.subr.mxu0 0.0
    %834 = vmatpush1.msra.mxu0 0.0
    %835 = vmatprep.subr.mxu0 0.0
    %836 = vmatpush1.msra.mxu0 0.0
    %837 = vmatprep.subr.mxu0 0.0
    %838 = vmatpush1.msra.mxu0 0.0
    %839 = vmatprep.subr.mxu0 0.0
    %840 = vmatpush1.msra.mxu0 0.0
    %841 = vmatprep.subr.mxu0 0.0
    %842 = vmatpush1.msra.mxu0 %v196
    %843 = vmatprep.subr.mxu0 0.0
    %844 = vmatpush1.msra.mxu0 %v195
    %845 = vmatprep.subr.mxu0 0.0
    %846 = vmatpush1.msra.mxu0 %v194
    %847 = vmatprep.subr.mxu0 0.0
    %848 = vmatpush1.msra.mxu0 %v193
    %849 = vmatprep.subr.mxu0 0.0
    %850 = vmatpush2.msra.mxu0 0.0
    %851 = vmatprep.subr.mxu0 0.0
    %852 = vmatpush2.msra.mxu0 0.0
    %853 = vmatprep.subr.mxu0 0.0
    %854 = vmatpush2.msra.mxu0 0.0
    %855 = vmatprep.subr.mxu0 0.0
    %856 = vmatpush2.msra.mxu0 0.0
    %857 = vmatprep.subr.mxu0 0.0
    %858 = vmatpush2.msra.mxu0 0.0
    %859 = vmatprep.subr.mxu0 0.0
    %860 = vmatpush2.msra.mxu0 0.0
    %861 = vmatprep.subr.mxu0 0.0
    %862 = vmatpush2.msra.mxu0 0.0
    %863 = vmatprep.subr.mxu0 0.0
    %864 = vmatpush2.msra.mxu0 0.0
    %865 = vmatprep.subr.mxu0 0.0
    %866 = vmatpush2.msra.mxu0 0.0
    %867 = vmatprep.subr.mxu0 0.0
    %868 = vmatpush2.msra.mxu0 0.0
    %869 = vmatprep.subr.mxu0 0.0
    %870 = vmatpush2.msra.mxu0 0.0
    %871 = vmatprep.subr.mxu0 0.0
    %872 = vmatpush2.msra.mxu0 0.0
    %873 = vmatprep.subr.mxu0 0.0
    %874 = vmatpush2.msra.mxu0 0.0
    %875 = vmatprep.subr.mxu0 0.0
    %876 = vmatpush2.msra.mxu0 0.0
    %877 = vmatprep.subr.mxu0 0.0
    %878 = vmatpush2.msra.mxu0 0.0
    %879 = vmatprep.subr.mxu0 0.0
    %880 = vmatpush2.msra.mxu0 0.0
    %881 = vmatprep.mubr.f32.mxu0 0.0
    %882 = vmatmul.mubr.f32.gmra.mxu0 %v815
    %v883 = vpop.f32.mrf.mxu0
    %v884 = vadd.f32 0.0, %v883
    %v885 = vpop.f32.mrf.mxu0
    %886 = vdwg.mxu0
    %v887 = vadd.f32 %v190, %v884
    %v888 = vtanh.pop %v887
    %v889 = vmul.f32 %v888, %v52
    %v890 = vadd.f32 %v889, %v53
    %891 = vrot.lane.b32.xlu0 %v890, 96
    %v892 = vpop.permute.xlu0 %891
    %893 = vrot.lane.b32.xlu0 %v890, 64
    %v894 = vpop.permute.xlu0 %893
    %895 = vrot.lane.b32.xlu0 %v890, 32
    %v896 = vpop.permute.xlu0 %895
    %v897 = vmul.f32 %v892, %v811
    %v898 = vmul.f32 %v890, %v894
    %v899 = vadd.f32 %v897, %v898
    %v900 = vtanh.pop %v899
    %v901 = vmul.f32 %v896, %v900
    %v902 = vld [vmem:[%s4] sm:$0xff]
    %v903 = vld [vmem:[%s4 + $0x8] sm:$0xff]
    %v904 = vld [vmem:[%s4 + $0x10] sm:$0xff]
    %v905 = vld [vmem:[%s4 + $0x18] sm:$0xff]
    %v906 = vld [vmem:[%s6] sm:$0x1]
    %v908 = vlaneseq
    %v909 = vshrl.u32 %v908, 7
    %v910 = vsub.s32 0, %v909
    %v911 = vrot.slane %v906, %v910
    %v914 = vsel %vm197, %v901, 0
    %916 = vmatprep.subr.mxu0 0.0
    %917 = vmatpush1.msra.mxu0 0.0
    %918 = vmatprep.subr.mxu0 0.0
    %919 = vmatpush1.msra.mxu0 0.0
    %920 = vmatprep.subr.mxu0 0.0
    %921 = vmatpush1.msra.mxu0 0.0
    %922 = vmatprep.subr.mxu0 0.0
    %923 = vmatpush1.msra.mxu0 0.0
    %924 = vmatprep.subr.mxu0 0.0
    %925 = vmatpush1.msra.mxu0 0.0
    %926 = vmatprep.subr.mxu0 0.0
    %927 = vmatpush1.msra.mxu0 0.0
    %928 = vmatprep.subr.mxu0 0.0
    %929 = vmatpush1.msra.mxu0 0.0
    %930 = vmatprep.subr.mxu0 0.0
    %931 = vmatpush1.msra.mxu0 0.0
    %932 = vmatprep.subr.mxu0 0.0
    %933 = vmatpush1.msra.mxu0 0.0
    %934 = vmatprep.subr.mxu0 0.0
    %935 = vmatpush1.msra.mxu0 0.0
    %936 = vmatprep.subr.mxu0 0.0
    %937 = vmatpush1.msra.mxu0 0.0
    %938 = vmatprep.subr.mxu0 0.0
    %939 = vmatpush1.msra.mxu0 0.0
    %940 = vmatprep.subr.mxu0 0.0
    %941 = vmatpush1.msra.mxu0 %v905
    %942 = vmatprep.subr.mxu0 0.0
    %943 = vmatpush1.msra.mxu0 %v904
    %944 = vmatprep.subr.mxu0 0.0
    %945 = vmatpush1.msra.mxu0 %v903
    %946 = vmatprep.subr.mxu0 0.0
    %947 = vmatpush1.msra.mxu0 %v902
    %948 = vmatprep.subr.mxu0 0.0
    %949 = vmatpush2.msra.mxu0 0.0
    %950 = vmatprep.subr.mxu0 0.0
    %951 = vmatpush2.msra.mxu0 0.0
    %952 = vmatprep.subr.mxu0 0.0
    %953 = vmatpush2.msra.mxu0 0.0
    %954 = vmatprep.subr.mxu0 0.0
    %955 = vmatpush2.msra.mxu0 0.0
    %956 = vmatprep.subr.mxu0 0.0
    %957 = vmatpush2.msra.mxu0 0.0
    %958 = vmatprep.subr.mxu0 0.0
    %959 = vmatpush2.msra.mxu0 0.0
    %960 = vmatprep.subr.mxu0 0.0
    %961 = vmatpush2.msra.mxu0 0.0
    %962 = vmatprep.subr.mxu0 0.0
    %963 = vmatpush2.msra.mxu0 0.0
    %964 = vmatprep.subr.mxu0 0.0
    %965 = vmatpush2.msra.mxu0 0.0
    %966 = vmatprep.subr.mxu0 0.0
    %967 = vmatpush2.msra.mxu0 0.0
    %968 = vmatprep.subr.mxu0 0.0
    %969 = vmatpush2.msra.mxu0 0.0
    %970 = vmatprep.subr.mxu0 0.0
    %971 = vmatpush2.msra.mxu0 0.0
    %972 = vmatprep.subr.mxu0 0.0
    %973 = vmatpush2.msra.mxu0 0.0
    %974 = vmatprep.subr.mxu0 0.0
    %975 = vmatpush2.msra.mxu0 0.0
    %976 = vmatprep.subr.mxu0 0.0
    %977 = vmatpush2.msra.mxu0 0.0
    %978 = vmatprep.subr.mxu0 0.0
    %979 = vmatpush2.msra.mxu0 0.0
    %980 = vmatprep.mubr.f32.mxu0 0.0
    %981 = vmatmul.mubr.f32.gmra.mxu0 %v287
    %v982 = vpop.f32.mrf.mxu0
    %v983 = vadd.f32 %v911, %v982
    %v984 = vpop.f32.mrf.mxu0
    %985 = vmatprep.mubr.f32.mxu0 0.0
    %986 = vmatmul.mubr.f32.gmra.mxu0 %v375
    %v987 = vpop.f32.mrf.mxu0
    %v988 = vadd.f32 %v911, %v987
    %v989 = vpop.f32.mrf.mxu0
    %990 = vmatprep.mubr.f32.mxu0 0.0
    %991 = vmatmul.mubr.f32.gmra.mxu0 %v463
    %v992 = vpop.f32.mrf.mxu0
    %v993 = vadd.f32 %v911, %v992
    %v994 = vpop.f32.mrf.mxu0
    %995 = vmatprep.mubr.f32.mxu0 0.0
    %996 = vmatmul.mubr.f32.gmra.mxu0 %v551
    %v997 = vpop.f32.mrf.mxu0
    %v998 = vadd.f32 %v911, %v997
    %v999 = vpop.f32.mrf.mxu0
    %1000 = vmatprep.mubr.f32.mxu0 0.0
    %1001 = vmatmul.mubr.f32.gmra.mxu0 %v639
    %v1002 = vpop.f32.mrf.mxu0
    %v1003 = vadd.f32 %v911, %v1002
    %v1004 = vpop.f32.mrf.mxu0
    %1005 = vmatprep.mubr.f32.mxu0 0.0
    %1006 = vmatmul.mubr.f32.gmra.mxu0 %v727
    %v1007 = vpop.f32.mrf.mxu0
    %v1008 = vadd.f32 %v911, %v1007
    %v1009 = vpop.f32.mrf.mxu0
    %1010 = vmatprep.mubr.f32.mxu0 0.0
    %1011 = vmatmul.mubr.f32.gmra.mxu0 %v815
    %v1012 = vpop.f32.mrf.mxu0
    %v1013 = vadd.f32 %v911, %v1012
    %v1014 = vpop.f32.mrf.mxu0
    %1015 = vmatprep.mubr.f32.mxu0 0.0
    %1016 = vmatmul.mubr.f32.gmra.mxu0 %v914
    %v1017 = vpop.f32.mrf.mxu0
    %v1018 = vadd.f32 %v911, %v1017
    %v1019 = vpop.f32.mrf.mxu0
    %1020 = vdwg.mxu0
    %v1021 = vld [vmem:[%s5] sm:$0xff]
    %v1022 = vld [vmem:[%s5 + $0x8] sm:$0xff]
    %v1023 = vld [vmem:[%s5 + $0x10] sm:$0xff]
    %v1024 = vld [vmem:[%s5 + $0x18] sm:$0xff]
    %1025 = vmatprep.subr.mxu0 0.0
    %1026 = vmatpush1.msra.mxu0 0.0
    %1027 = vmatprep.subr.mxu0 0.0
    %1028 = vmatpush1.msra.mxu0 0.0
    %1029 = vmatprep.subr.mxu0 0.0
    %1030 = vmatpush1.msra.mxu0 0.0
    %1031 = vmatprep.subr.mxu0 0.0
    %1032 = vmatpush1.msra.mxu0 0.0
    %1033 = vmatprep.subr.mxu0 0.0
    %1034 = vmatpush1.msra.mxu0 0.0
    %1035 = vmatprep.subr.mxu0 0.0
    %1036 = vmatpush1.msra.mxu0 0.0
    %1037 = vmatprep.subr.mxu0 0.0
    %1038 = vmatpush1.msra.mxu0 0.0
    %1039 = vmatprep.subr.mxu0 0.0
    %1040 = vmatpush1.msra.mxu0 0.0
    %1041 = vmatprep.subr.mxu0 0.0
    %1042 = vmatpush1.msra.mxu0 0.0
    %1043 = vmatprep.subr.mxu0 0.0
    %1044 = vmatpush1.msra.mxu0 0.0
    %1045 = vmatprep.subr.mxu0 0.0
    %1046 = vmatpush1.msra.mxu0 0.0
    %1047 = vmatprep.subr.mxu0 0.0
    %1048 = vmatpush1.msra.mxu0 0.0
    %1049 = vmatprep.subr.mxu0 0.0
    %1050 = vmatpush1.msra.mxu0 %v1024
    %1051 = vmatprep.subr.mxu0 0.0
    %1052 = vmatpush1.msra.mxu0 %v1023
    %1053 = vmatprep.subr.mxu0 0.0
    %1054 = vmatpush1.msra.mxu0 %v1022
    %1055 = vmatprep.subr.mxu0 0.0
    %1056 = vmatpush1.msra.mxu0 %v1021
    %1057 = vmatprep.subr.mxu0 0.0
    %1058 = vmatpush2.msra.mxu0 0.0
    %1059 = vmatprep.subr.mxu0 0.0
    %1060 = vmatpush2.msra.mxu0 0.0
    %1061 = vmatprep.subr.mxu0 0.0
    %1062 = vmatpush2.msra.mxu0 0.0
    %1063 = vmatprep.subr.mxu0 0.0
    %1064 = vmatpush2.msra.mxu0 0.0
    %1065 = vmatprep.subr.mxu0 0.0
    %1066 = vmatpush2.msra.mxu0 0.0
    %1067 = vmatprep.subr.mxu0 0.0
    %1068 = vmatpush2.msra.mxu0 0.0
    %1069 = vmatprep.subr.mxu0 0.0
    %1070 = vmatpush2.msra.mxu0 0.0
    %1071 = vmatprep.subr.mxu0 0.0
    %1072 = vmatpush2.msra.mxu0 0.0
    %1073 = vmatprep.subr.mxu0 0.0
    %1074 = vmatpush2.msra.mxu0 0.0
    %1075 = vmatprep.subr.mxu0 0.0
    %1076 = vmatpush2.msra.mxu0 0.0
    %1077 = vmatprep.subr.mxu0 0.0
    %1078 = vmatpush2.msra.mxu0 0.0
    %1079 = vmatprep.subr.mxu0 0.0
    %1080 = vmatpush2.msra.mxu0 0.0
    %1081 = vmatprep.subr.mxu0 0.0
    %1082 = vmatpush2.msra.mxu0 0.0
    %1083 = vmatprep.subr.mxu0 0.0
    %1084 = vmatpush2.msra.mxu0 0.0
    %1085 = vmatprep.subr.mxu0 0.0
    %1086 = vmatpush2.msra.mxu0 0.0
    %1087 = vmatprep.subr.mxu0 0.0
    %1088 = vmatpush2.msra.mxu0 0.0
    %1089 = vmatprep.mubr.f32.mxu0 0.0
    %1090 = vmatmul.mubr.f32.gmra.mxu0 %v199
    %v1091 = vpop.f32.mrf.mxu0
    %v1092 = vadd.f32 0.0, %v1091
    %v1093 = vpop.f32.mrf.mxu0
    %1094 = vdwg.mxu0
    %v1095 = vadd.f32 %v983, %v1092
    %v1096 = vtanh.pop %v1095
    %v1097 = vmul.f32 %v1096, %v52
    %v1098 = vadd.f32 %v1097, %v53
    %1099 = vrot.lane.b32.xlu0 %v1098, 96
    %v1100 = vpop.permute.xlu0 %1099
    %1101 = vrot.lane.b32.xlu0 %v1098, 64
    %v1102 = vpop.permute.xlu0 %1101
    %1103 = vrot.lane.b32.xlu0 %v1098, 32
    %v1104 = vpop.permute.xlu0 %1103
    %v1105 = vmul.f32 %v1100, 0.0
    %v1106 = vmul.f32 %v1098, %v1102
    %v1107 = vadd.f32 %v1105, %v1106
    %v1108 = vtanh.pop %v1107
    %v1109 = vmul.f32 %v1104, %v1108
    %v1111 = vsel %vm197, %v1109, 0
    %1113 = vmatprep.subr.mxu0 0.0
    %1114 = vmatpush1.msra.mxu0 0.0
    %1115 = vmatprep.subr.mxu0 0.0
    %1116 = vmatpush1.msra.mxu0 0.0
    %1117 = vmatprep.subr.mxu0 0.0
    %1118 = vmatpush1.msra.mxu0 0.0
    %1119 = vmatprep.subr.mxu0 0.0
    %1120 = vmatpush1.msra.mxu0 0.0
    %1121 = vmatprep.subr.mxu0 0.0
    %1122 = vmatpush1.msra.mxu0 0.0
    %1123 = vmatprep.subr.mxu0 0.0
    %1124 = vmatpush1.msra.mxu0 0.0
    %1125 = vmatprep.subr.mxu0 0.0
    %1126 = vmatpush1.msra.mxu0 0.0
    %1127 = vmatprep.subr.mxu0 0.0
    %1128 = vmatpush1.msra.mxu0 0.0
    %1129 = vmatprep.subr.mxu0 0.0
    %1130 = vmatpush1.msra.mxu0 0.0
    %1131 = vmatprep.subr.mxu0 0.0
    %1132 = vmatpush1.msra.mxu0 0.0
    %1133 = vmatprep.subr.mxu0 0.0
    %1134 = vmatpush1.msra.mxu0 0.0
    %1135 = vmatprep.subr.mxu0 0.0
    %1136 = vmatpush1.msra.mxu0 0.0
    %1137 = vmatprep.subr.mxu0 0.0
    %1138 = vmatpush1.msra.mxu0 %v1024
    %1139 = vmatprep.subr.mxu0 0.0
    %1140 = vmatpush1.msra.mxu0 %v1023
    %1141 = vmatprep.subr.mxu0 0.0
    %1142 = vmatpush1.msra.mxu0 %v1022
    %1143 = vmatprep.subr.mxu0 0.0
    %1144 = vmatpush1.msra.mxu0 %v1021
    %1145 = vmatprep.subr.mxu0 0.0
    %1146 = vmatpush2.msra.mxu0 0.0
    %1147 = vmatprep.subr.mxu0 0.0
    %1148 = vmatpush2.msra.mxu0 0.0
    %1149 = vmatprep.subr.mxu0 0.0
    %1150 = vmatpush2.msra.mxu0 0.0
    %1151 = vmatprep.subr.mxu0 0.0
    %1152 = vmatpush2.msra.mxu0 0.0
    %1153 = vmatprep.subr.mxu0 0.0
    %1154 = vmatpush2.msra.mxu0 0.0
    %1155 = vmatprep.subr.mxu0 0.0
    %1156 = vmatpush2.msra.mxu0 0.0
    %1157 = vmatprep.subr.mxu0 0.0
    %1158 = vmatpush2.msra.mxu0 0.0
    %1159 = vmatprep.subr.mxu0 0.0
    %1160 = vmatpush2.msra.mxu0 0.0
    %1161 = vmatprep.subr.mxu0 0.0
    %1162 = vmatpush2.msra.mxu0 0.0
    %1163 = vmatprep.subr.mxu0 0.0
    %1164 = vmatpush2.msra.mxu0 0.0
    %1165 = vmatprep.subr.mxu0 0.0
    %1166 = vmatpush2.msra.mxu0 0.0
    %1167 = vmatprep.subr.mxu0 0.0
    %1168 = vmatpush2.msra.mxu0 0.0
    %1169 = vmatprep.subr.mxu0 0.0
    %1170 = vmatpush2.msra.mxu0 0.0
    %1171 = vmatprep.subr.mxu0 0.0
    %1172 = vmatpush2.msra.mxu0 0.0
    %1173 = vmatprep.subr.mxu0 0.0
    %1174 = vmatpush2.msra.mxu0 0.0
    %1175 = vmatprep.subr.mxu0 0.0
    %1176 = vmatpush2.msra.mxu0 0.0
    %1177 = vmatprep.mubr.f32.mxu0 0.0
    %1178 = vmatmul.mubr.f32.gmra.mxu0 %v1111
    %v1179 = vpop.f32.mrf.mxu0
    %v1180 = vadd.f32 0.0, %v1179
    %v1181 = vpop.f32.mrf.mxu0
    %1182 = vdwg.mxu0
    %v1183 = vadd.f32 %v988, %v1180
    %v1184 = vtanh.pop %v1183
    %v1185 = vmul.f32 %v1184, %v52
    %v1186 = vadd.f32 %v1185, %v53
    %1187 = vrot.lane.b32.xlu0 %v1186, 96
    %v1188 = vpop.permute.xlu0 %1187
    %1189 = vrot.lane.b32.xlu0 %v1186, 64
    %v1190 = vpop.permute.xlu0 %1189
    %1191 = vrot.lane.b32.xlu0 %v1186, 32
    %v1192 = vpop.permute.xlu0 %1191
    %v1193 = vmul.f32 %v1188, %v1107
    %v1194 = vmul.f32 %v1186, %v1190
    %v1195 = vadd.f32 %v1193, %v1194
    %v1196 = vtanh.pop %v1195
    %v1197 = vmul.f32 %v1192, %v1196
    %v1199 = vsel %vm197, %v1197, 0
    %1201 = vmatprep.subr.mxu0 0.0
    %1202 = vmatpush1.msra.mxu0 0.0
    %1203 = vmatprep.subr.mxu0 0.0
    %1204 = vmatpush1.msra.mxu0 0.0
    %1205 = vmatprep.subr.mxu0 0.0
    %1206 = vmatpush1.msra.mxu0 0.0
    %1207 = vmatprep.subr.mxu0 0.0
    %1208 = vmatpush1.msra.mxu0 0.0
    %1209 = vmatprep.subr.mxu0 0.0
    %1210 = vmatpush1.msra.mxu0 0.0
    %1211 = vmatprep.subr.mxu0 0.0
    %1212 = vmatpush1.msra.mxu0 0.0
    %1213 = vmatprep.subr.mxu0 0.0
    %1214 = vmatpush1.msra.mxu0 0.0
    %1215 = vmatprep.subr.mxu0 0.0
    %1216 = vmatpush1.msra.mxu0 0.0
    %1217 = vmatprep.subr.mxu0 0.0
    %1218 = vmatpush1.msra.mxu0 0.0
    %1219 = vmatprep.subr.mxu0 0.0
    %1220 = vmatpush1.msra.mxu0 0.0
    %1221 = vmatprep.subr.mxu0 0.0
    %1222 = vmatpush1.msra.mxu0 0.0
    %1223 = vmatprep.subr.mxu0 0.0
    %1224 = vmatpush1.msra.mxu0 0.0
    %1225 = vmatprep.subr.mxu0 0.0
    %1226 = vmatpush1.msra.mxu0 %v1024
    %1227 = vmatprep.subr.mxu0 0.0
    %1228 = vmatpush1.msra.mxu0 %v1023
    %1229 = vmatprep.subr.mxu0 0.0
    %1230 = vmatpush1.msra.mxu0 %v1022
    %1231 = vmatprep.subr.mxu0 0.0
    %1232 = vmatpush1.msra.mxu0 %v1021
    %1233 = vmatprep.subr.mxu0 0.0
    %1234 = vmatpush2.msra.mxu0 0.0
    %1235 = vmatprep.subr.mxu0 0.0
    %1236 = vmatpush2.msra.mxu0 0.0
    %1237 = vmatprep.subr.mxu0 0.0
    %1238 = vmatpush2.msra.mxu0 0.0
    %1239 = vmatprep.subr.mxu0 0.0
    %1240 = vmatpush2.msra.mxu0 0.0
    %1241 = vmatprep.subr.mxu0 0.0
    %1242 = vmatpush2.msra.mxu0 0.0
    %1243 = vmatprep.subr.mxu0 0.0
    %1244 = vmatpush2.msra.mxu0 0.0
    %1245 = vmatprep.subr.mxu0 0.0
    %1246 = vmatpush2.msra.mxu0 0.0
    %1247 = vmatprep.subr.mxu0 0.0
    %1248 = vmatpush2.msra.mxu0 0.0
    %1249 = vmatprep.subr.mxu0 0.0
    %1250 = vmatpush2.msra.mxu0 0.0
    %1251 = vmatprep.subr.mxu0 0.0
    %1252 = vmatpush2.msra.mxu0 0.0
    %1253 = vmatprep.subr.mxu0 0.0
    %1254 = vmatpush2.msra.mxu0 0.0
    %1255 = vmatprep.subr.mxu0 0.0
    %1256 = vmatpush2.msra.mxu0 0.0
    %1257 = vmatprep.subr.mxu0 0.0
    %1258 = vmatpush2.msra.mxu0 0.0
    %1259 = vmatprep.subr.mxu0 0.0
    %1260 = vmatpush2.msra.mxu0 0.0
    %1261 = vmatprep.subr.mxu0 0.0
    %1262 = vmatpush2.msra.mxu0 0.0
    %1263 = vmatprep.subr.mxu0 0.0
    %1264 = vmatpush2.msra.mxu0 0.0
    %1265 = vmatprep.mubr.f32.mxu0 0.0
    %1266 = vmatmul.mubr.f32.gmra.mxu0 %v1199
    %v1267 = vpop.f32.mrf.mxu0
    %v1268 = vadd.f32 0.0, %v1267
    %v1269 = vpop.f32.mrf.mxu0
    %1270 = vdwg.mxu0
    %v1271 = vadd.f32 %v993, %v1268
    %v1272 = vtanh.pop %v1271
    %v1273 = vmul.f32 %v1272, %v52
    %v1274 = vadd.f32 %v1273, %v53
    %1275 = vrot.lane.b32.xlu0 %v1274, 96
    %v1276 = vpop.permute.xlu0 %1275
    %1277 = vrot.lane.b32.xlu0 %v1274, 64
    %v1278 = vpop.permute.xlu0 %1277
    %1279 = vrot.lane.b32.xlu0 %v1274, 32
    %v1280 = vpop.permute.xlu0 %1279
    %v1281 = vmul.f32 %v1276, %v1195
    %v1282 = vmul.f32 %v1274, %v1278
    %v1283 = vadd.f32 %v1281, %v1282
    %v1284 = vtanh.pop %v1283
    %v1285 = vmul.f32 %v1280, %v1284
    %v1287 = vsel %vm197, %v1285, 0
    %1289 = vmatprep.subr.mxu0 0.0
    %1290 = vmatpush1.msra.mxu0 0.0
    %1291 = vmatprep.subr.mxu0 0.0
    %1292 = vmatpush1.msra.mxu0 0.0
    %1293 = vmatprep.subr.mxu0 0.0
    %1294 = vmatpush1.msra.mxu0 0.0
    %1295 = vmatprep.subr.mxu0 0.0
    %1296 = vmatpush1.msra.mxu0 0.0
    %1297 = vmatprep.subr.mxu0 0.0
    %1298 = vmatpush1.msra.mxu0 0.0
    %1299 = vmatprep.subr.mxu0 0.0
    %1300 = vmatpush1.msra.mxu0 0.0
    %1301 = vmatprep.subr.mxu0 0.0
    %1302 = vmatpush1.msra.mxu0 0.0
    %1303 = vmatprep.subr.mxu0 0.0
    %1304 = vmatpush1.msra.mxu0 0.0
    %1305 = vmatprep.subr.mxu0 0.0
    %1306 = vmatpush1.msra.mxu0 0.0
    %1307 = vmatprep.subr.mxu0 0.0
    %1308 = vmatpush1.msra.mxu0 0.0
    %1309 = vmatprep.subr.mxu0 0.0
    %1310 = vmatpush1.msra.mxu0 0.0
    %1311 = vmatprep.subr.mxu0 0.0
    %1312 = vmatpush1.msra.mxu0 0.0
    %1313 = vmatprep.subr.mxu0 0.0
    %1314 = vmatpush1.msra.mxu0 %v1024
    %1315 = vmatprep.subr.mxu0 0.0
    %1316 = vmatpush1.msra.mxu0 %v1023
    %1317 = vmatprep.subr.mxu0 0.0
    %1318 = vmatpush1.msra.mxu0 %v1022
    %1319 = vmatprep.subr.mxu0 0.0
    %1320 = vmatpush1.msra.mxu0 %v1021
    %1321 = vmatprep.subr.mxu0 0.0
    %1322 = vmatpush2.msra.mxu0 0.0
    %1323 = vmatprep.subr.mxu0 0.0
    %1324 = vmatpush2.msra.mxu0 0.0
    %1325 = vmatprep.subr.mxu0 0.0
    %1326 = vmatpush2.msra.mxu0 0.0
    %1327 = vmatprep.subr.mxu0 0.0
    %1328 = vmatpush2.msra.mxu0 0.0
    %1329 = vmatprep.subr.mxu0 0.0
    %1330 = vmatpush2.msra.mxu0 0.0
    %1331 = vmatprep.subr.mxu0 0.0
    %1332 = vmatpush2.msra.mxu0 0.0
    %1333 = vmatprep.subr.mxu0 0.0
    %1334 = vmatpush2.msra.mxu0 0.0
    %1335 = vmatprep.subr.mxu0 0.0
    %1336 = vmatpush2.msra.mxu0 0.0
    %1337 = vmatprep.subr.mxu0 0.0
    %1338 = vmatpush2.msra.mxu0 0.0
    %1339 = vmatprep.subr.mxu0 0.0
    %1340 = vmatpush2.msra.mxu0 0.0
    %1341 = vmatprep.subr.mxu0 0.0
    %1342 = vmatpush2.msra.mxu0 0.0
    %1343 = vmatprep.subr.mxu0 0.0
    %1344 = vmatpush2.msra.mxu0 0.0
    %1345 = vmatprep.subr.mxu0 0.0
    %1346 = vmatpush2.msra.mxu0 0.0
    %1347 = vmatprep.subr.mxu0 0.0
    %1348 = vmatpush2.msra.mxu0 0.0
    %1349 = vmatprep.subr.mxu0 0.0
    %1350 = vmatpush2.msra.mxu0 0.0
    %1351 = vmatprep.subr.mxu0 0.0
    %1352 = vmatpush2.msra.mxu0 0.0
    %1353 = vmatprep.mubr.f32.mxu0 0.0
    %1354 = vmatmul.mubr.f32.gmra.mxu0 %v1287
    %v1355 = vpop.f32.mrf.mxu0
    %v1356 = vadd.f32 0.0, %v1355
    %v1357 = vpop.f32.mrf.mxu0
    %1358 = vdwg.mxu0
    %v1359 = vadd.f32 %v998, %v1356
    %v1360 = vtanh.pop %v1359
    %v1361 = vmul.f32 %v1360, %v52
    %v1362 = vadd.f32 %v1361, %v53
    %1363 = vrot.lane.b32.xlu0 %v1362, 96
    %v1364 = vpop.permute.xlu0 %1363
    %1365 = vrot.lane.b32.xlu0 %v1362, 64
    %v1366 = vpop.permute.xlu0 %1365
    %1367 = vrot.lane.b32.xlu0 %v1362, 32
    %v1368 = vpop.permute.xlu0 %1367
    %v1369 = vmul.f32 %v1364, %v1283
    %v1370 = vmul.f32 %v1362, %v1366
    %v1371 = vadd.f32 %v1369, %v1370
    %v1372 = vtanh.pop %v1371
    %v1373 = vmul.f32 %v1368, %v1372
    %v1375 = vsel %vm197, %v1373, 0
    %1377 = vmatprep.subr.mxu0 0.0
    %1378 = vmatpush1.msra.mxu0 0.0
    %1379 = vmatprep.subr.mxu0 0.0
    %1380 = vmatpush1.msra.mxu0 0.0
    %1381 = vmatprep.subr.mxu0 0.0
    %1382 = vmatpush1.msra.mxu0 0.0
    %1383 = vmatprep.subr.mxu0 0.0
    %1384 = vmatpush1.msra.mxu0 0.0
    %1385 = vmatprep.subr.mxu0 0.0
    %1386 = vmatpush1.msra.mxu0 0.0
    %1387 = vmatprep.subr.mxu0 0.0
    %1388 = vmatpush1.msra.mxu0 0.0
    %1389 = vmatprep.subr.mxu0 0.0
    %1390 = vmatpush1.msra.mxu0 0.0
    %1391 = vmatprep.subr.mxu0 0.0
    %1392 = vmatpush1.msra.mxu0 0.0
    %1393 = vmatprep.subr.mxu0 0.0
    %1394 = vmatpush1.msra.mxu0 0.0
    %1395 = vmatprep.subr.mxu0 0.0
    %1396 = vmatpush1.msra.mxu0 0.0
    %1397 = vmatprep.subr.mxu0 0.0
    %1398 = vmatpush1.msra.mxu0 0.0
    %1399 = vmatprep.subr.mxu0 0.0
    %1400 = vmatpush1.msra.mxu0 0.0
    %1401 = vmatprep.subr.mxu0 0.0
    %1402 = vmatpush1.msra.mxu0 %v1024
    %1403 = vmatprep.subr.mxu0 0.0
    %1404 = vmatpush1.msra.mxu0 %v1023
    %1405 = vmatprep.subr.mxu0 0.0
    %1406 = vmatpush1.msra.mxu0 %v1022
    %1407 = vmatprep.subr.mxu0 0.0
    %1408 = vmatpush1.msra.mxu0 %v1021
    %1409 = vmatprep.subr.mxu0 0.0
    %1410 = vmatpush2.msra.mxu0 0.0
    %1411 = vmatprep.subr.mxu0 0.0
    %1412 = vmatpush2.msra.mxu0 0.0
    %1413 = vmatprep.subr.mxu0 0.0
    %1414 = vmatpush2.msra.mxu0 0.0
    %1415 = vmatprep.subr.mxu0 0.0
    %1416 = vmatpush2.msra.mxu0 0.0
    %1417 = vmatprep.subr.mxu0 0.0
    %1418 = vmatpush2.msra.mxu0 0.0
    %1419 = vmatprep.subr.mxu0 0.0
    %1420 = vmatpush2.msra.mxu0 0.0
    %1421 = vmatprep.subr.mxu0 0.0
    %1422 = vmatpush2.msra.mxu0 0.0
    %1423 = vmatprep.subr.mxu0 0.0
    %1424 = vmatpush2.msra.mxu0 0.0
    %1425 = vmatprep.subr.mxu0 0.0
    %1426 = vmatpush2.msra.mxu0 0.0
    %1427 = vmatprep.subr.mxu0 0.0
    %1428 = vmatpush2.msra.mxu0 0.0
    %1429 = vmatprep.subr.mxu0 0.0
    %1430 = vmatpush2.msra.mxu0 0.0
    %1431 = vmatprep.subr.mxu0 0.0
    %1432 = vmatpush2.msra.mxu0 0.0
    %1433 = vmatprep.subr.mxu0 0.0
    %1434 = vmatpush2.msra.mxu0 0.0
    %1435 = vmatprep.subr.mxu0 0.0
    %1436 = vmatpush2.msra.mxu0 0.0
    %1437 = vmatprep.subr.mxu0 0.0
    %1438 = vmatpush2.msra.mxu0 0.0
    %1439 = vmatprep.subr.mxu0 0.0
    %1440 = vmatpush2.msra.mxu0 0.0
    %1441 = vmatprep.mubr.f32.mxu0 0.0
    %1442 = vmatmul.mubr.f32.gmra.mxu0 %v1375
    %v1443 = vpop.f32.mrf.mxu0
    %v1444 = vadd.f32 0.0, %v1443
    %v1445 = vpop.f32.mrf.mxu0
    %1446 = vdwg.mxu0
    %v1447 = vadd.f32 %v1003, %v1444
    %v1448 = vtanh.pop %v1447
    %v1449 = vmul.f32 %v1448, %v52
    %v1450 = vadd.f32 %v1449, %v53
    %1451 = vrot.lane.b32.xlu0 %v1450, 96
    %v1452 = vpop.permute.xlu0 %1451
    %1453 = vrot.lane.b32.xlu0 %v1450, 64
    %v1454 = vpop.permute.xlu0 %1453
    %1455 = vrot.lane.b32.xlu0 %v1450, 32
    %v1456 = vpop.permute.xlu0 %1455
    %v1457 = vmul.f32 %v1452, %v1371
    %v1458 = vmul.f32 %v1450, %v1454
    %v1459 = vadd.f32 %v1457, %v1458
    %v1460 = vtanh.pop %v1459
    %v1461 = vmul.f32 %v1456, %v1460
    %v1463 = vsel %vm197, %v1461, 0
    %1465 = vmatprep.subr.mxu0 0.0
    %1466 = vmatpush1.msra.mxu0 0.0
    %1467 = vmatprep.subr.mxu0 0.0
    %1468 = vmatpush1.msra.mxu0 0.0
    %1469 = vmatprep.subr.mxu0 0.0
    %1470 = vmatpush1.msra.mxu0 0.0
    %1471 = vmatprep.subr.mxu0 0.0
    %1472 = vmatpush1.msra.mxu0 0.0
    %1473 = vmatprep.subr.mxu0 0.0
    %1474 = vmatpush1.msra.mxu0 0.0
    %1475 = vmatprep.subr.mxu0 0.0
    %1476 = vmatpush1.msra.mxu0 0.0
    %1477 = vmatprep.subr.mxu0 0.0
    %1478 = vmatpush1.msra.mxu0 0.0
    %1479 = vmatprep.subr.mxu0 0.0
    %1480 = vmatpush1.msra.mxu0 0.0
    %1481 = vmatprep.subr.mxu0 0.0
    %1482 = vmatpush1.msra.mxu0 0.0
    %1483 = vmatprep.subr.mxu0 0.0
    %1484 = vmatpush1.msra.mxu0 0.0
    %1485 = vmatprep.subr.mxu0 0.0
    %1486 = vmatpush1.msra.mxu0 0.0
    %1487 = vmatprep.subr.mxu0 0.0
    %1488 = vmatpush1.msra.mxu0 0.0
    %1489 = vmatprep.subr.mxu0 0.0
    %1490 = vmatpush1.msra.mxu0 %v1024
    %1491 = vmatprep.subr.mxu0 0.0
    %1492 = vmatpush1.msra.mxu0 %v1023
    %1493 = vmatprep.subr.mxu0 0.0
    %1494 = vmatpush1.msra.mxu0 %v1022
    %1495 = vmatprep.subr.mxu0 0.0
    %1496 = vmatpush1.msra.mxu0 %v1021
    %1497 = vmatprep.subr.mxu0 0.0
    %1498 = vmatpush2.msra.mxu0 0.0
    %1499 = vmatprep.subr.mxu0 0.0
    %1500 = vmatpush2.msra.mxu0 0.0
    %1501 = vmatprep.subr.mxu0 0.0
    %1502 = vmatpush2.msra.mxu0 0.0
    %1503 = vmatprep.subr.mxu0 0.0
    %1504 = vmatpush2.msra.mxu0 0.0
    %1505 = vmatprep.subr.mxu0 0.0
    %1506 = vmatpush2.msra.mxu0 0.0
    %1507 = vmatprep.subr.mxu0 0.0
    %1508 = vmatpush2.msra.mxu0 0.0
    %1509 = vmatprep.subr.mxu0 0.0
    %1510 = vmatpush2.msra.mxu0 0.0
    %1511 = vmatprep.subr.mxu0 0.0
    %1512 = vmatpush2.msra.mxu0 0.0
    %1513 = vmatprep.subr.mxu0 0.0
    %1514 = vmatpush2.msra.mxu0 0.0
    %1515 = vmatprep.subr.mxu0 0.0
    %1516 = vmatpush2.msra.mxu0 0.0
    %1517 = vmatprep.subr.mxu0 0.0
    %1518 = vmatpush2.msra.mxu0 0.0
    %1519 = vmatprep.subr.mxu0 0.0
    %1520 = vmatpush2.msra.mxu0 0.0
    %1521 = vmatprep.subr.mxu0 0.0
    %1522 = vmatpush2.msra.mxu0 0.0
    %1523 = vmatprep.subr.mxu0 0.0
    %1524 = vmatpush2.msra.mxu0 0.0
    %1525 = vmatprep.subr.mxu0 0.0
    %1526 = vmatpush2.msra.mxu0 0.0
    %1527 = vmatprep.subr.mxu0 0.0
    %1528 = vmatpush2.msra.mxu0 0.0
    %1529 = vmatprep.mubr.f32.mxu0 0.0
    %1530 = vmatmul.mubr.f32.gmra.mxu0 %v1463
    %v1531 = vpop.f32.mrf.mxu0
    %v1532 = vadd.f32 0.0, %v1531
    %v1533 = vpop.f32.mrf.mxu0
    %1534 = vdwg.mxu0
    %v1535 = vadd.f32 %v1008, %v1532
    %v1536 = vtanh.pop %v1535
    %v1537 = vmul.f32 %v1536, %v52
    %v1538 = vadd.f32 %v1537, %v53
    %1539 = vrot.lane.b32.xlu0 %v1538, 96
    %v1540 = vpop.permute.xlu0 %1539
    %1541 = vrot.lane.b32.xlu0 %v1538, 64
    %v1542 = vpop.permute.xlu0 %1541
    %1543 = vrot.lane.b32.xlu0 %v1538, 32
    %v1544 = vpop.permute.xlu0 %1543
    %v1545 = vmul.f32 %v1540, %v1459
    %v1546 = vmul.f32 %v1538, %v1542
    %v1547 = vadd.f32 %v1545, %v1546
    %v1548 = vtanh.pop %v1547
    %v1549 = vmul.f32 %v1544, %v1548
    %v1551 = vsel %vm197, %v1549, 0
    %1553 = vmatprep.subr.mxu0 0.0
    %1554 = vmatpush1.msra.mxu0 0.0
    %1555 = vmatprep.subr.mxu0 0.0
    %1556 = vmatpush1.msra.mxu0 0.0
    %1557 = vmatprep.subr.mxu0 0.0
    %1558 = vmatpush1.msra.mxu0 0.0
    %1559 = vmatprep.subr.mxu0 0.0
    %1560 = vmatpush1.msra.mxu0 0.0
    %1561 = vmatprep.subr.mxu0 0.0
    %1562 = vmatpush1.msra.mxu0 0.0
    %1563 = vmatprep.subr.mxu0 0.0
    %1564 = vmatpush1.msra.mxu0 0.0
    %1565 = vmatprep.subr.mxu0 0.0
    %1566 = vmatpush1.msra.mxu0 0.0
    %1567 = vmatprep.subr.mxu0 0.0
    %1568 = vmatpush1.msra.mxu0 0.0
    %1569 = vmatprep.subr.mxu0 0.0
    %1570 = vmatpush1.msra.mxu0 0.0
    %1571 = vmatprep.subr.mxu0 0.0
    %1572 = vmatpush1.msra.mxu0 0.0
    %1573 = vmatprep.subr.mxu0 0.0
    %1574 = vmatpush1.msra.mxu0 0.0
    %1575 = vmatprep.subr.mxu0 0.0
    %1576 = vmatpush1.msra.mxu0 0.0
    %1577 = vmatprep.subr.mxu0 0.0
    %1578 = vmatpush1.msra.mxu0 %v1024
    %1579 = vmatprep.subr.mxu0 0.0
    %1580 = vmatpush1.msra.mxu0 %v1023
    %1581 = vmatprep.subr.mxu0 0.0
    %1582 = vmatpush1.msra.mxu0 %v1022
    %1583 = vmatprep.subr.mxu0 0.0
    %1584 = vmatpush1.msra.mxu0 %v1021
    %1585 = vmatprep.subr.mxu0 0.0
    %1586 = vmatpush2.msra.mxu0 0.0
    %1587 = vmatprep.subr.mxu0 0.0
    %1588 = vmatpush2.msra.mxu0 0.0
    %1589 = vmatprep.subr.mxu0 0.0
    %1590 = vmatpush2.msra.mxu0 0.0
    %1591 = vmatprep.subr.mxu0 0.0
    %1592 = vmatpush2.msra.mxu0 0.0
    %1593 = vmatprep.subr.mxu0 0.0
    %1594 = vmatpush2.msra.mxu0 0.0
    %1595 = vmatprep.subr.mxu0 0.0
    %1596 = vmatpush2.msra.mxu0 0.0
    %1597 = vmatprep.subr.mxu0 0.0
    %1598 = vmatpush2.msra.mxu0 0.0
    %1599 = vmatprep.subr.mxu0 0.0
    %1600 = vmatpush2.msra.mxu0 0.0
    %1601 = vmatprep.subr.mxu0 0.0
    %1602 = vmatpush2.msra.mxu0 0.0
    %1603 = vmatprep.subr.mxu0 0.0
    %1604 = vmatpush2.msra.mxu0 0.0
    %1605 = vmatprep.subr.mxu0 0.0
    %1606 = vmatpush2.msra.mxu0 0.0
    %1607 = vmatprep.subr.mxu0 0.0
    %1608 = vmatpush2.msra.mxu0 0.0
    %1609 = vmatprep.subr.mxu0 0.0
    %1610 = vmatpush2.msra.mxu0 0.0
    %1611 = vmatprep.subr.mxu0 0.0
    %1612 = vmatpush2.msra.mxu0 0.0
    %1613 = vmatprep.subr.mxu0 0.0
    %1614 = vmatpush2.msra.mxu0 0.0
    %1615 = vmatprep.subr.mxu0 0.0
    %1616 = vmatpush2.msra.mxu0 0.0
    %1617 = vmatprep.mubr.f32.mxu0 0.0
    %1618 = vmatmul.mubr.f32.gmra.mxu0 %v1551
    %v1619 = vpop.f32.mrf.mxu0
    %v1620 = vadd.f32 0.0, %v1619
    %v1621 = vpop.f32.mrf.mxu0
    %1622 = vdwg.mxu0
    %v1623 = vadd.f32 %v1013, %v1620
    %v1624 = vtanh.pop %v1623
    %v1625 = vmul.f32 %v1624, %v52
    %v1626 = vadd.f32 %v1625, %v53
    %1627 = vrot.lane.b32.xlu0 %v1626, 96
    %v1628 = vpop.permute.xlu0 %1627
    %1629 = vrot.lane.b32.xlu0 %v1626, 64
    %v1630 = vpop.permute.xlu0 %1629
    %1631 = vrot.lane.b32.xlu0 %v1626, 32
    %v1632 = vpop.permute.xlu0 %1631
    %v1633 = vmul.f32 %v1628, %v1547
    %v1634 = vmul.f32 %v1626, %v1630
    %v1635 = vadd.f32 %v1633, %v1634
    %v1636 = vtanh.pop %v1635
    %v1637 = vmul.f32 %v1632, %v1636
    %v1639 = vsel %vm197, %v1637, 0
    %1641 = vmatprep.subr.mxu0 0.0
    %1642 = vmatpush1.msra.mxu0 0.0
    %1643 = vmatprep.subr.mxu0 0.0
    %1644 = vmatpush1.msra.mxu0 0.0
    %1645 = vmatprep.subr.mxu0 0.0
    %1646 = vmatpush1.msra.mxu0 0.0
    %1647 = vmatprep.subr.mxu0 0.0
    %1648 = vmatpush1.msra.mxu0 0.0
    %1649 = vmatprep.subr.mxu0 0.0
    %1650 = vmatpush1.msra.mxu0 0.0
    %1651 = vmatprep.subr.mxu0 0.0
    %1652 = vmatpush1.msra.mxu0 0.0
    %1653 = vmatprep.subr.mxu0 0.0
    %1654 = vmatpush1.msra.mxu0 0.0
    %1655 = vmatprep.subr.mxu0 0.0
    %1656 = vmatpush1.msra.mxu0 0.0
    %1657 = vmatprep.subr.mxu0 0.0
    %1658 = vmatpush1.msra.mxu0 0.0
    %1659 = vmatprep.subr.mxu0 0.0
    %1660 = vmatpush1.msra.mxu0 0.0
    %1661 = vmatprep.subr.mxu0 0.0
    %1662 = vmatpush1.msra.mxu0 0.0
    %1663 = vmatprep.subr.mxu0 0.0
    %1664 = vmatpush1.msra.mxu0 0.0
    %1665 = vmatprep.subr.mxu0 0.0
    %1666 = vmatpush1.msra.mxu0 %v1024
    %1667 = vmatprep.subr.mxu0 0.0
    %1668 = vmatpush1.msra.mxu0 %v1023
    %1669 = vmatprep.subr.mxu0 0.0
    %1670 = vmatpush1.msra.mxu0 %v1022
    %1671 = vmatprep.subr.mxu0 0.0
    %1672 = vmatpush1.msra.mxu0 %v1021
    %1673 = vmatprep.subr.mxu0 0.0
    %1674 = vmatpush2.msra.mxu0 0.0
    %1675 = vmatprep.subr.mxu0 0.0
    %1676 = vmatpush2.msra.mxu0 0.0
    %1677 = vmatprep.subr.mxu0 0.0
    %1678 = vmatpush2.msra.mxu0 0.0
    %1679 = vmatprep.subr.mxu0 0.0
    %1680 = vmatpush2.msra.mxu0 0.0
    %1681 = vmatprep.subr.mxu0 0.0
    %1682 = vmatpush2.msra.mxu0 0.0
    %1683 = vmatprep.subr.mxu0 0.0
    %1684 = vmatpush2.msra.mxu0 0.0
    %1685 = vmatprep.subr.mxu0 0.0
    %1686 = vmatpush2.msra.mxu0 0.0
    %1687 = vmatprep.subr.mxu0 0.0
    %1688 = vmatpush2.msra.mxu0 0.0
    %1689 = vmatprep.subr.mxu0 0.0
    %1690 = vmatpush2.msra.mxu0 0.0
    %1691 = vmatprep.subr.mxu0 0.0
    %1692 = vmatpush2.msra.mxu0 0.0
    %1693 = vmatprep.subr.mxu0 0.0
    %1694 = vmatpush2.msra.mxu0 0.0
    %1695 = vmatprep.subr.mxu0 0.0
    %1696 = vmatpush2.msra.mxu0 0.0
    %1697 = vmatprep.subr.mxu0 0.0
    %1698 = vmatpush2.msra.mxu0 0.0
    %1699 = vmatprep.subr.mxu0 0.0
    %1700 = vmatpush2.msra.mxu0 0.0
    %1701 = vmatprep.subr.mxu0 0.0
    %1702 = vmatpush2.msra.mxu0 0.0
    %1703 = vmatprep.subr.mxu0 0.0
    %1704 = vmatpush2.msra.mxu0 0.0
    %1705 = vmatprep.mubr.f32.mxu0 0.0
    %1706 = vmatmul.mubr.f32.gmra.mxu0 %v1639
    %v1707 = vpop.f32.mrf.mxu0
    %v1708 = vadd.f32 0.0, %v1707
    %v1709 = vpop.f32.mrf.mxu0
    %1710 = vdwg.mxu0
    %v1711 = vadd.f32 %v1018, %v1708
    %v1712 = vtanh.pop %v1711
    %v1713 = vmul.f32 %v1712, %v52
    %v1714 = vadd.f32 %v1713, %v53
    %1715 = vrot.lane.b32.xlu0 %v1714, 96
    %v1716 = vpop.permute.xlu0 %1715
    %1717 = vrot.lane.b32.xlu0 %v1714, 64
    %v1718 = vpop.permute.xlu0 %1717
    %1719 = vrot.lane.b32.xlu0 %v1714, 32
    %v1720 = vpop.permute.xlu0 %1719
    %v1721 = vmul.f32 %v1716, %v1635
    %v1722 = vmul.f32 %v1714, %v1718
    %v1723 = vadd.f32 %v1721, %v1722
    %v1724 = vtanh.pop %v1723
    %v1725 = vmul.f32 %v1720, %v1724
    %v1726 = vld [vmem:[%s7] sm:$0xff]
    %v1727 = vld [vmem:[%s7 + $0x8] sm:$0xff]
    %v1728 = vld [vmem:[%s7 + $0x10] sm:$0xff]
    %v1729 = vld [vmem:[%s7 + $0x18] sm:$0xff]
    %v1730 = vld [vmem:[%s8] sm:$0x1]
    %v1732 = vlaneseq
    %v1733 = vshrl.u32 %v1732, 7
    %v1734 = vsub.s32 0, %v1733
    %v1735 = vrot.slane %v1730, %v1734
    %v1738 = vsel %vm197, %v1725, 0
    %1740 = vmatprep.subr.mxu0 0.0
    %1741 = vmatpush1.msra.mxu0 0.0
    %1742 = vmatprep.subr.mxu0 0.0
    %1743 = vmatpush1.msra.mxu0 0.0
    %1744 = vmatprep.subr.mxu0 0.0
    %1745 = vmatpush1.msra.mxu0 0.0
    %1746 = vmatprep.subr.mxu0 0.0
    %1747 = vmatpush1.msra.mxu0 0.0
    %1748 = vmatprep.subr.mxu0 0.0
    %1749 = vmatpush1.msra.mxu0 0.0
    %1750 = vmatprep.subr.mxu0 0.0
    %1751 = vmatpush1.msra.mxu0 0.0
    %1752 = vmatprep.subr.mxu0 0.0
    %1753 = vmatpush1.msra.mxu0 0.0
    %1754 = vmatprep.subr.mxu0 0.0
    %1755 = vmatpush1.msra.mxu0 0.0
    %1756 = vmatprep.subr.mxu0 0.0
    %1757 = vmatpush1.msra.mxu0 0.0
    %1758 = vmatprep.subr.mxu0 0.0
    %1759 = vmatpush1.msra.mxu0 0.0
    %1760 = vmatprep.subr.mxu0 0.0
    %1761 = vmatpush1.msra.mxu0 0.0
    %1762 = vmatprep.subr.mxu0 0.0
    %1763 = vmatpush1.msra.mxu0 0.0
    %1764 = vmatprep.subr.mxu0 0.0
    %1765 = vmatpush1.msra.mxu0 %v1729
    %1766 = vmatprep.subr.mxu0 0.0
    %1767 = vmatpush1.msra.mxu0 %v1728
    %1768 = vmatprep.subr.mxu0 0.0
    %1769 = vmatpush1.msra.mxu0 %v1727
    %1770 = vmatprep.subr.mxu0 0.0
    %1771 = vmatpush1.msra.mxu0 %v1726
    %1772 = vmatprep.subr.mxu0 0.0
    %1773 = vmatpush2.msra.mxu0 0.0
    %1774 = vmatprep.subr.mxu0 0.0
    %1775 = vmatpush2.msra.mxu0 0.0
    %1776 = vmatprep.subr.mxu0 0.0
    %1777 = vmatpush2.msra.mxu0 0.0
    %1778 = vmatprep.subr.mxu0 0.0
    %1779 = vmatpush2.msra.mxu0 0.0
    %1780 = vmatprep.subr.mxu0 0.0
    %1781 = vmatpush2.msra.mxu0 0.0
    %1782 = vmatprep.subr.mxu0 0.0
    %1783 = vmatpush2.msra.mxu0 0.0
    %1784 = vmatprep.subr.mxu0 0.0
    %1785 = vmatpush2.msra.mxu0 0.0
    %1786 = vmatprep.subr.mxu0 0.0
    %1787 = vmatpush2.msra.mxu0 0.0
    %1788 = vmatprep.subr.mxu0 0.0
    %1789 = vmatpush2.msra.mxu0 0.0
    %1790 = vmatprep.subr.mxu0 0.0
    %1791 = vmatpush2.msra.mxu0 0.0
    %1792 = vmatprep.subr.mxu0 0.0
    %1793 = vmatpush2.msra.mxu0 0.0
    %1794 = vmatprep.subr.mxu0 0.0
    %1795 = vmatpush2.msra.mxu0 0.0
    %1796 = vmatprep.subr.mxu0 0.0
    %1797 = vmatpush2.msra.mxu0 0.0
    %1798 = vmatprep.subr.mxu0 0.0
    %1799 = vmatpush2.msra.mxu0 0.0
    %1800 = vmatprep.subr.mxu0 0.0
    %1801 = vmatpush2.msra.mxu0 0.0
    %1802 = vmatprep.subr.mxu0 0.0
    %1803 = vmatpush2.msra.mxu0 0.0
    %1804 = vmatprep.mubr.f32.mxu0 0.0
    %1805 = vmatmul.mubr.f32.gmra.mxu0 %v1738
    %v1806 = vpop.f32.mrf.mxu0
    %v1807 = vadd.f32 %v1735, %v1806
    %v1808 = vpop.f32.mrf.mxu0
    %1809 = vdwg.mxu0
    %v1810 = vxor.u32 %v1807, 2147483648
    %v1811 = vmul.f32 %v1810, 1.442695
    %v1812 = vpow.pop %v1811
    %v1813 = vadd.f32 %v1812, 1.0
    %v1814 = vrcp.pop %v1813
    %v1815 = vmul.f32 1.0, %v1814
    %v1816 = vld [vmem:[%s9] sm:$0xff]
    %v1817 = vld [vmem:[%s9 + $0x8] sm:$0xff]
    %v1818 = vld [vmem:[%s9 + $0x10] sm:$0xff]
    %v1819 = vld [vmem:[%s9 + $0x18] sm:$0xff]
    %v1820 = vld [vmem:[%s9 + $0x20] sm:$0xff]
    %v1821 = vld [vmem:[%s9 + $0x28] sm:$0xff]
    %v1822 = vld [vmem:[%s9 + $0x30] sm:$0xff]
    %v1823 = vld [vmem:[%s9 + $0x38] sm:$0xff]
    %v1824 = vld [vmem:[%s10] sm:$0x1]
    %v1826 = vlaneseq
    %v1827 = vshrl.u32 %v1826, 7
    %v1828 = vsub.s32 0, %v1827
    %v1829 = vrot.slane %v1824, %v1828
    %vm1831 = vcmask 523264
    %v1833 = vsel %vm1831, %v1815, 0
    %1835 = vmatprep.subr.mxu0 0.0
    %1836 = vmatpush1.msra.mxu0 0.0
    %1837 = vmatprep.subr.mxu0 0.0
    %1838 = vmatpush1.msra.mxu0 0.0
    %1839 = vmatprep.subr.mxu0 0.0
    %1840 = vmatpush1.msra.mxu0 0.0
    %1841 = vmatprep.subr.mxu0 0.0
    %1842 = vmatpush1.msra.mxu0 0.0
    %1843 = vmatprep.subr.mxu0 0.0
    %1844 = vmatpush1.msra.mxu0 0.0
    %1845 = vmatprep.subr.mxu0 0.0
    %1846 = vmatpush1.msra.mxu0 0.0
    %1847 = vmatprep.subr.mxu0 0.0
    %1848 = vmatpush1.msra.mxu0 0.0
    %1849 = vmatprep.subr.mxu0 0.0
    %1850 = vmatpush1.msra.mxu0 0.0
    %1851 = vmatprep.subr.mxu0 0.0
    %1852 = vmatpush1.msra.mxu0 %v1823
    %1853 = vmatprep.subr.mxu0 0.0
    %1854 = vmatpush1.msra.mxu0 %v1822
    %1855 = vmatprep.subr.mxu0 0.0
    %1856 = vmatpush1.msra.mxu0 %v1821
    %1857 = vmatprep.subr.mxu0 0.0
    %1858 = vmatpush1.msra.mxu0 %v1820
    %1859 = vmatprep.subr.mxu0 0.0
    %1860 = vmatpush1.msra.mxu0 %v1819
    %1861 = vmatprep.subr.mxu0 0.0
    %1862 = vmatpush1.msra.mxu0 %v1818
    %1863 = vmatprep.subr.mxu0 0.0
    %1864 = vmatpush1.msra.mxu0 %v1817
    %1865 = vmatprep.subr.mxu0 0.0
    %1866 = vmatpush1.msra.mxu0 %v1816
    %1867 = vmatprep.subr.mxu0 0.0
    %1868 = vmatpush2.msra.mxu0 0.0
    %1869 = vmatprep.subr.mxu0 0.0
    %1870 = vmatpush2.msra.mxu0 0.0
    %1871 = vmatprep.subr.mxu0 0.0
    %1872 = vmatpush2.msra.mxu0 0.0
    %1873 = vmatprep.subr.mxu0 0.0
    %1874 = vmatpush2.msra.mxu0 0.0
    %1875 = vmatprep.subr.mxu0 0.0
    %1876 = vmatpush2.msra.mxu0 0.0
    %1877 = vmatprep.subr.mxu0 0.0
    %1878 = vmatpush2.msra.mxu0 0.0
    %1879 = vmatprep.subr.mxu0 0.0
    %1880 = vmatpush2.msra.mxu0 0.0
    %1881 = vmatprep.subr.mxu0 0.0
    %1882 = vmatpush2.msra.mxu0 0.0
    %1883 = vmatprep.subr.mxu0 0.0
    %1884 = vmatpush2.msra.mxu0 0.0
    %1885 = vmatprep.subr.mxu0 0.0
    %1886 = vmatpush2.msra.mxu0 0.0
    %1887 = vmatprep.subr.mxu0 0.0
    %1888 = vmatpush2.msra.mxu0 0.0
    %1889 = vmatprep.subr.mxu0 0.0
    %1890 = vmatpush2.msra.mxu0 0.0
    %1891 = vmatprep.subr.mxu0 0.0
    %1892 = vmatpush2.msra.mxu0 0.0
    %1893 = vmatprep.subr.mxu0 0.0
    %1894 = vmatpush2.msra.mxu0 0.0
    %1895 = vmatprep.subr.mxu0 0.0
    %1896 = vmatpush2.msra.mxu0 0.0
    %1897 = vmatprep.subr.mxu0 0.0
    %1898 = vmatpush2.msra.mxu0 0.0
    %1899 = vmatprep.mubr.f32.mxu0 0.0
    %1900 = vmatmul.mubr.f32.gmra.mxu0 %v1833
    %v1901 = vpop.f32.mrf.mxu0
    %v1902 = vadd.f32 %v1829, %v1901
    %v1903 = vpop.f32.mrf.mxu0
    %1904 = vdwg.mxu0
    %v1905 = vsel %vm63, %v39, 0.0
    %v1906 = vsel %vm63, %v40, 0.0
    %v1907 = vadd.f32 %v1905, %v1906
    %v1908 = vsel %vm63, %v41, 0.0
    %v1909 = vadd.f32 %v1907, %v1908
    %v1910 = vsel %vm63, %v42, 0.0
    %v1911 = vadd.f32 %v1909, %v1910
    %v1912 = vsel %vm63, %v43, 0.0
    %v1913 = vadd.f32 %v1911, %v1912
    %v1914 = vsel %vm63, %v44, 0.0
    %v1915 = vadd.f32 %v1913, %v1914
    %v1916 = vsel %vm63, %v45, 0.0
    %v1917 = vadd.f32 %v1915, %v1916
    %v1918 = vsel %vm63, %v46, 0.0
    %v1919 = vadd.f32 %v1917, %v1918
    %v1920 = vrcp.pop 8.0
    %v1921 = vmul.f32 %v1919, %v1920
    %v1922 = vadd.f32 %v1902, %v1921
    %1923 = vst.msk [vmem:[#allocation2] sm:$0xff] %vm63, %v1922
    // Predicated region
    $region46: #{lstm_model_forward.1} parent=1 // pred_check
      _
    $region47: #{lstm_model_forward.1} parent=1 // pred_check_branch
      %1925 = sbr.rel (0) target = $region49
    $region48: #{lstm_model_forward.1} parent=1 // pred_region
      %s1927 = ssub.s32 128, 128
      %1928 = vsyncadd [#allocation3], %s1927
      %s1930 = sshll.u32 [#allocation2], 4
      %s1931 = int_to_ptr.vmem [resolvable:$true] %s1930
      %1933 = dma.vmem_to_hbm [thread:$0]  %s1931, 128, %s11, [#allocation3]
    $region49: #{lstm_model_forward.1} parent=1 // pred_fallthru
      _
    // Predicated region
    $region50: #{lstm_model_forward.1} parent=1 // pred_check
      _
    $region51: #{lstm_model_forward.1} parent=1 // pred_check_branch
      %1935 = sbr.rel (0) target = $region53
    $region52: #{lstm_model_forward.1} parent=1 // pred_region
      %1936 = dma.done [#allocation3], 128
    $region53: #{lstm_model_forward.1} parent=1 // pred_fallthru
      _
    %1937 = vsyncpa [#allocation3], 1

</llo_original>
